<compile_context>
chip_gen: v7x
topology: tpu7x:2x2x1
jax: 0.10.0
libtpu: 0.0.40
codegen_flags: <defaults>
</compile_context>

<pallas_src>
import functools
import math

import jax
import jax.numpy as jnp
from jax import lax
from jax.experimental import pallas as pl
from jax.experimental.pallas import tpu as pltpu


def _round_up(x, m):
    return (x + m - 1) // m * m


def _sublane_multiple(dtype):
    itemsize = jnp.dtype(dtype).itemsize
    if itemsize >= 4:
        return 8
    if itemsize == 2:
        return 16
    return 32


_INV_SQRT2 = 1.0 / math.sqrt(2.0)


def _gelu_exact(x):
    # Matches torch.nn.functional.gelu default (erf form).
    return 0.5 * x * (1.0 + lax.erf(x * _INV_SQRT2))


def _gelu_tanh(x):
    # EUP-friendly tanh approximation (torch gelu approximate="tanh").
    return jax.nn.gelu(x, approximate=True)


def mlp_kernel(x_ref, wu_ref, bu_ref, wd_ref, bd_ref, o_ref, acc_ref, *,
               gelu_fn, precision):
    """grid = (M/tm, H/th).  The H axis is a reduction:
        acc += gelu(x @ W_up[:, h] + b_up[h]) @ W_down[h, :]
    The output (+ b_down) is written once on the last H step."""
    j = pl.program_id(1)

    # Up projection on this hidden slice: (tm, E) @ (E, th) -> (tm, th), f32 acc.
    h = jnp.dot(x_ref[...], wu_ref[...],
                preferred_element_type=jnp.float32, precision=precision)
    h = gelu_fn(h + bu_ref[...])

    # Down projection of this slice.  Cast the intermediate to the weight dtype
    # (bf16 in real models) so the second matmul runs at native MXU rate; the
    # accumulation stays in f32 in VMEM scratch.
    partial = jnp.dot(h.astype(wd_ref.dtype), wd_ref[...],
                      preferred_element_type=jnp.float32, precision=precision)

    @pl.when(j == 0)
    def _():
        acc_ref[...] = partial            # direct assign: no zeros-init pass

    @pl.when(j > 0)
    def _():
        acc_ref[...] += partial

    @pl.when(j == pl.num_programs(1) - 1)
    def _():
        o_ref[...] = (acc_ref[...] + bd_ref[...]).astype(o_ref.dtype)


def _pick_tile(total, target, multiple):
    """Tile <= target (rounded to `multiple`) chosen to bound padding waste."""
    total_r = _round_up(max(total, 1), multiple)
    n = max(1, math.ceil(total_r / max(target, multiple)))
    tile = _round_up(math.ceil(total_r / n), multiple)
    return tile, n * tile


def _vmem_estimate(tm, th, e_pad, a_bytes, w_bytes):
    est = 2 * (tm * e_pad * a_bytes      # x block (double-buffered)
               + e_pad * th * w_bytes    # W_up block
               + 8 * th * w_bytes        # b_up block (sublane-padded)
               + th * e_pad * w_bytes    # W_down block
               + 8 * e_pad * w_bytes     # b_down block
               + tm * e_pad * a_bytes)   # output block
    est += tm * e_pad * 4                # f32 accumulator scratch
    est += 2 * tm * th * 4               # f32 GELU intermediate (+ cast copy)
    return est


def mlp_forward(x, w_up, b_up, w_down, b_down, *,
                tile_m=None, tile_h=None, approximate_gelu=False,
                precision=None):
    """x: [..., E]; w_up: [E, H]; b_up: [H]; w_down: [H, E]; b_down: [E]."""
    orig_shape = x.shape
    E = orig_shape[-1]
    H = w_up.shape[1]

    x2d = x.reshape(-1, E)
    M = x2d.shape[0]

    act_dt = x.dtype
    w_dt = w_up.dtype
    a_b = jnp.dtype(act_dt).itemsize
    w_b = jnp.dtype(w_dt).itemsize

    # ---- device-aware VMEM budget & tile defaults ----
    try:
        vmem_cap = int(pltpu.get_tpu_info().vmem_capacity_bytes)
    except Exception:
        vmem_cap = 64 << 20                       # conservative (v7x) fallback
    budget = int(0.75 * vmem_cap)                 # 20-25% headroom

    if tile_m is None:
        # Large row tiles hide per-tile weight re-streaming; v6e/v5e (128 MiB)
        # can afford 1024, v7x (64 MiB) stays at 512.
        tile_m = 1024 if vmem_cap >= (100 << 20) else 512
    if tile_h is None:
        tile_h = 512
    # TODO(synk): on v7x prefer an even number of row tiles (>=2) when M allows
    # so the "parallel" M axis shards across both TensorCores.

    sub_m = _sublane_multiple(act_dt)
    E_pad = _round_up(E, 128)
    tm, M_pad = _pick_tile(M, tile_m, sub_m)
    th, H_pad = _pick_tile(H, tile_h, 128)

    # Shrink tiles until the (correctly counted) VMEM footprint fits.
    while _vmem_estimate(tm, th, E_pad, a_b, w_b) > budget:
        if th > 128:
            th, H_pad = _pick_tile(H, max(128, th // 2), 128)
        elif tm > sub_m:
            tm, M_pad = _pick_tile(M, max(sub_m, tm // 2), sub_m)
        else:
            break

    est = _vmem_estimate(tm, th, E_pad, a_b, w_b)
    vmem_limit = int(min(budget, max(32 << 20, int(est * 1.25))))

    # ---- pad only when needed (shapes are static; aligned inputs copy-free) ----
    if M_pad == M and E_pad == E:
        x_p = x2d
    else:
        x_p = jnp.zeros((M_pad, E_pad), act_dt).at[:M, :E].set(x2d)
    if E_pad == E and H_pad == H:
        wu_p, wd_p = w_up, w_down
    else:
        wu_p = jnp.zeros((E_pad, H_pad), w_dt).at[:E, :H].set(w_up)
        wd_p = jnp.zeros((H_pad, E_pad), w_down.dtype).at[:H, :E].set(w_down)
    if H_pad == H:
        bu_p = b_up.reshape(1, H)
    else:
        bu_p = jnp.zeros((1, H_pad), b_up.dtype).at[0, :H].set(b_up)
    if E_pad == E:
        bd_p = b_down.reshape(1, E)
    else:
        bd_p = jnp.zeros((1, E_pad), b_down.dtype).at[0, :E].set(b_down)

    grid = (M_pad // tm, H_pad // th)
    n_row_tiles = grid[0]

    if precision is None:
        # fp32 params: exact parity via multi-pass MXU; bf16: native rate.
        precision = (lax.Precision.HIGHEST if w_dt == jnp.float32
                     else lax.Precision.DEFAULT)
    gelu_fn = _gelu_tanh if approximate_gelu else _gelu_exact

    cost = pl.CostEstimate(
        flops=int(4 * M_pad * E_pad * H_pad),
        transcendentals=int(M_pad * H_pad),
        bytes_accessed=int(2 * M_pad * E_pad * a_b
                           + n_row_tiles * 2 * E_pad * H_pad * w_b
                           + (H_pad + E_pad) * w_b),
    )

    kernel = functools.partial(mlp_kernel, gelu_fn=gelu_fn, precision=precision)

    out = pl.pallas_call(
        kernel,
        out_shape=jax.ShapeDtypeStruct((M_pad, E_pad), act_dt),
        grid=grid,
        in_specs=[
            pl.BlockSpec((tm, E_pad), lambda i, j: (i, 0)),   # x row tile
            pl.BlockSpec((E_pad, th), lambda i, j: (0, j)),   # W_up column slice
            pl.BlockSpec((1, th), lambda i, j: (0, j)),       # b_up slice
            pl.BlockSpec((th, E_pad), lambda i, j: (j, 0)),   # W_down row slice
            pl.BlockSpec((1, E_pad), lambda i, j: (0, 0)),    # b_down
        ],
        out_specs=pl.BlockSpec((tm, E_pad), lambda i, j: (i, 0)),
        scratch_shapes=[pltpu.VMEM((tm, E_pad), jnp.float32)],
        compiler_params=pltpu.CompilerParams(
            dimension_semantics=("parallel", "arbitrary"),
            vmem_limit_bytes=vmem_limit,
        ),
        cost_estimate=cost,
    )(x_p, wu_p, bu_p, wd_p, bd_p)

    if M_pad == M and E_pad == E:
        return out.reshape(orig_shape)
    return out[:M, :E].reshape(orig_shape)


def _init_linear_params(key, in_features, out_features, dtype=jnp.float32):
    # Mimic torch.nn.Linear default init: U(-1/sqrt(fan_in), 1/sqrt(fan_in)).
    kw, kb = jax.random.split(key)
    bound = 1.0 / math.sqrt(in_features)
    # PyTorch weight is (out, in); we store the transposed (in, out) layout.
    w_t = jax.random.uniform(kw, (in_features, out_features), dtype,
                             minval=-bound, maxval=bound)
    b = jax.random.uniform(kb, (out_features,), dtype, minval=-bound, maxval=bound)
    return w_t, b


if __name__ == "__main__":
    # Small shapes consistent with the module: batch=2, seq=8, embed_dim=32,
    # mlp_channels=64 (padded internally to 128-lane tiles).
    B, T, E, H = 2, 8, 32, 64

    key = jax.random.PRNGKey(0)
    k_x, k_up, k_down = jax.random.split(key, 3)

    x = jax.random.normal(k_x, (B, T, E), dtype=jnp.float32)
    w_up, b_up = _init_linear_params(k_up, E, H)
    w_down, b_down = _init_linear_params(k_down, H, E)

    y = mlp_forward(x, w_up, b_up, w_down, b_down)
    y = jax.block_until_ready(y)

    # Pure-JAX reference (same HIGHEST precision as the fp32 kernel path).
    x2 = x.reshape(-1, E)
    h_ref = jnp.dot(x2, w_up, precision=lax.Precision.HIGHEST) + b_up
    h_ref = 0.5 * h_ref * (1.0 + lax.erf(h_ref * _INV_SQRT2))
    y_ref = (jnp.dot(h_ref, w_down, precision=lax.Precision.HIGHEST)
             + b_down).reshape(B, T, E)

    assert y.shape == (B, T, E)
    assert jnp.allclose(y, y_ref, atol=1e-5, rtol=1e-5), \
        float(jnp.max(jnp.abs(y - y_ref)))

    print("KERNEL_OK")
</pallas_src>

<mosaic_0001>
module attributes {stable_mosaic.version = 11 : i64} {
  func.func @mlp_kernel(%arg0: i32, %arg1: i32, %arg2: memref<16x128xf32, #tpu.memory_space<vmem>>, %arg3: memref<128x128xf32, #tpu.memory_space<vmem>>, %arg4: memref<1x128xf32, #tpu.memory_space<vmem>>, %arg5: memref<128x128xf32, #tpu.memory_space<vmem>>, %arg6: memref<1x128xf32, #tpu.memory_space<vmem>>, %arg7: memref<16x128xf32, #tpu.memory_space<vmem>>, %arg8: memref<16x128xf32, #tpu.memory_space<vmem>>) attributes {dimension_semantics = [#tpu.dimension_semantics<parallel>, #tpu.dimension_semantics<arbitrary>], iteration_bounds = array<i64: 1, 1>, scalar_prefetch = 0 : i64, scratch_operands = 1 : i64, tpu.core_type = #tpu.core_type<tc>, window_params = [{transform_indices = @transform_0, window_bounds = array<i64: 16, 128>}, {transform_indices = @transform_1, window_bounds = array<i64: 128, 128>}, {transform_indices = @transform_2, window_bounds = array<i64: 1, 128>}, {transform_indices = @transform_3, window_bounds = array<i64: 128, 128>}, {pipeline_mode = #tpu.pipeline_mode<synchronous>, transform_indices = @transform_4, window_bounds = array<i64: 1, 128>}, {transform_indices = @transform_5, window_bounds = array<i64: 16, 128>}]} {
    %c0 = arith.constant 0 : index
    %c0_0 = arith.constant 0 : index
    %0 = vector.load %arg2[%c0, %c0_0] : memref<16x128xf32, #tpu.memory_space<vmem>>, vector<16x128xf32>
    %c0_1 = arith.constant 0 : index
    %c0_2 = arith.constant 0 : index
    %1 = vector.load %arg3[%c0_1, %c0_2] : memref<128x128xf32, #tpu.memory_space<vmem>>, vector<128x128xf32>
    %cst = arith.constant dense<0.000000e+00> : vector<16x128xf32>
    %2 = tpu.matmul %0, %1, %cst {dimension_numbers = #tpu.dot_dimension_numbers<[1], [0], [0], [1], [0, 0, 1, 1], [], []>, precision = #tpu.contract_precision<fp32>} : vector<16x128xf32>, vector<128x128xf32>, vector<16x128xf32> -> vector<16x128xf32>
    %c0_3 = arith.constant 0 : index
    %c0_4 = arith.constant 0 : index
    %3 = vector.load %arg4[%c0_3, %c0_4] : memref<1x128xf32, #tpu.memory_space<vmem>>, vector<1x128xf32>
    %4 = vector.broadcast %3 : vector<1x128xf32> to vector<16x128xf32>
    %5 = arith.addf %2, %4 : vector<16x128xf32>
    %cst_5 = arith.constant 5.000000e-01 : f32
    %6 = vector.broadcast %cst_5 : f32 to vector<16x128xf32>
    %7 = arith.mulf %6, %5 : vector<16x128xf32>
    %cst_6 = arith.constant 0.707106769 : f32
    %8 = vector.broadcast %cst_6 : f32 to vector<16x128xf32>
    %9 = arith.mulf %5, %8 : vector<16x128xf32>
    %10 = math.erf %9 : vector<16x128xf32>
    %cst_7 = arith.constant 1.000000e+00 : f32
    %11 = vector.broadcast %cst_7 : f32 to vector<16x128xf32>
    %12 = arith.addf %11, %10 : vector<16x128xf32>
    %13 = arith.mulf %7, %12 : vector<16x128xf32>
    %c0_8 = arith.constant 0 : index
    %c0_9 = arith.constant 0 : index
    %14 = vector.load %arg5[%c0_8, %c0_9] : memref<128x128xf32, #tpu.memory_space<vmem>>, vector<128x128xf32>
    %cst_10 = arith.constant dense<0.000000e+00> : vector<16x128xf32>
    %15 = tpu.matmul %13, %14, %cst_10 {dimension_numbers = #tpu.dot_dimension_numbers<[1], [0], [0], [1], [0, 0, 1, 1], [], []>, precision = #tpu.contract_precision<fp32>} : vector<16x128xf32>, vector<128x128xf32>, vector<16x128xf32> -> vector<16x128xf32>
    %c0_i32 = arith.constant 0 : i32
    %16 = arith.cmpi eq, %arg1, %c0_i32 : i32
    %17 = arith.extui %16 : i1 to i32
    %c0_i32_11 = arith.constant 0 : i32
    %18 = arith.cmpi ne, %17, %c0_i32_11 : i32
    scf.if %18 {
      %c0_16 = arith.constant 0 : index
      %c0_17 = arith.constant 0 : index
      %25 = vector.load %arg8[%c0_16, %c0_17] : memref<16x128xf32, #tpu.memory_space<vmem>>, vector<16x128xf32>
      tpu.vector_store %arg8[%c0_16, %c0_17], %15 {strides = array<i32>} : memref<16x128xf32, #tpu.memory_space<vmem>>, vector<16x128xf32>,
    } else {
    }
    %c0_i32_12 = arith.constant 0 : i32
    %19 = arith.cmpi sgt, %arg1, %c0_i32_12 : i32
    %20 = arith.extui %19 : i1 to i32
    %c0_i32_13 = arith.constant 0 : i32
    %21 = arith.cmpi ne, %20, %c0_i32_13 : i32
    scf.if %21 {
      %c0_16 = arith.constant 0 : index
      %c0_17 = arith.constant 0 : index
      %25 = vector.load %arg8[%c0_16, %c0_17] : memref<16x128xf32, #tpu.memory_space<vmem>>, vector<16x128xf32>
      %26 = arith.addf %25, %15 : vector<16x128xf32>
      %c0_18 = arith.constant 0 : index
      %c0_19 = arith.constant 0 : index
      %27 = vector.load %arg8[%c0_18, %c0_19] : memref<16x128xf32, #tpu.memory_space<vmem>>, vector<16x128xf32>
      tpu.vector_store %arg8[%c0_18, %c0_19], %26 {strides = array<i32>} : memref<16x128xf32, #tpu.memory_space<vmem>>, vector<16x128xf32>,
    } else {
    }
    %c0_i32_14 = arith.constant 0 : i32
    %22 = arith.cmpi eq, %arg1, %c0_i32_14 : i32
    %23 = arith.extui %22 : i1 to i32
    %c0_i32_15 = arith.constant 0 : i32
    %24 = arith.cmpi ne, %23, %c0_i32_15 : i32
    scf.if %24 {
      %c0_16 = arith.constant 0 : index
      %c0_17 = arith.constant 0 : index
      %25 = vector.load %arg8[%c0_16, %c0_17] : memref<16x128xf32, #tpu.memory_space<vmem>>, vector<16x128xf32>
      %c0_18 = arith.constant 0 : index
      %c0_19 = arith.constant 0 : index
      %26 = vector.load %arg6[%c0_18, %c0_19] : memref<1x128xf32, #tpu.memory_space<vmem>>, vector<1x128xf32>
      %27 = vector.broadcast %26 : vector<1x128xf32> to vector<16x128xf32>
      %28 = arith.addf %25, %27 : vector<16x128xf32>
      %c0_20 = arith.constant 0 : index
      %c0_21 = arith.constant 0 : index
      %29 = vector.load %arg7[%c0_20, %c0_21] : memref<16x128xf32, #tpu.memory_space<vmem>>, vector<16x128xf32>
      tpu.vector_store %arg7[%c0_20, %c0_21], %28 {strides = array<i32>} : memref<16x128xf32, #tpu.memory_space<vmem>>, vector<16x128xf32>,
    } else {
    }
    return
  }
  func.func @transform_0(%arg0: i32, %arg1: i32) -> (i32, i32) {
    %c0_i32 = arith.constant 0 : i32
    %c0_i32_0 = arith.constant 0 : i32
    return %arg0, %c0_i32 : i32, i32
  }
  func.func @transform_1(%arg0: i32, %arg1: i32) -> (i32, i32) {
    %c0_i32 = arith.constant 0 : i32
    %c0_i32_0 = arith.constant 0 : i32
    return %c0_i32, %arg1 : i32, i32
  }
  func.func @transform_2(%arg0: i32, %arg1: i32) -> (i32, i32) {
    %c0_i32 = arith.constant 0 : i32
    %c0_i32_0 = arith.constant 0 : i32
    return %c0_i32, %arg1 : i32, i32
  }
  func.func @transform_3(%arg0: i32, %arg1: i32) -> (i32, i32) {
    %c0_i32 = arith.constant 0 : i32
    %c0_i32_0 = arith.constant 0 : i32
    return %arg1, %c0_i32 : i32, i32
  }
  func.func @transform_4(%arg0: i32, %arg1: i32) -> (i32, i32) {
    %c0_i32 = arith.constant 0 : i32
    %c0_i32_0 = arith.constant 0 : i32
    %c0_i32_1 = arith.constant 0 : i32
    return %c0_i32, %c0_i32_0 : i32, i32
  }
  func.func @transform_5(%arg0: i32, %arg1: i32) -> (i32, i32) {
    %c0_i32 = arith.constant 0 : i32
    %c0_i32_0 = arith.constant 0 : i32
    return %arg0, %c0_i32 : i32, i32
  }
}

</mosaic_0001>

<llo_original>
// kernel: tpu_custom_call.1
$region0: #{tpu_custom_call.1}
  #allocation0 [shape = 'u32[]', space=smem, size = 0x4, offset = 0x4, fixed_abs, tag = 'smem constant byte address 0x4 - core index']
  #allocation1 [shape = 'u32[144,128]{1,0:T(1,128)}', space=vmem, size = 0x12000, scoped, tag = 'internal scratch']
  #allocation2 [shape = 'f32[16,128]{1,0:T(8,128)}', space=vmem, size = 0x2000, scoped, tag = 'scratch operand']
  %s0 = inlined_call_operand.hbm [shape: f32[16,128], index: 0, kind: input, shape index: {}]
  %s1 = inlined_call_operand.hbm [shape: f32[128,128], index: 1, kind: input, shape index: {}]
  %s2 = inlined_call_operand.vmem [shape: f32[1,128], index: 2, kind: input, shape index: {}]
  %s3 = inlined_call_operand.hbm [shape: f32[128,128], index: 3, kind: input, shape index: {}]
  %s4 = inlined_call_operand.vmem [shape: f32[1,128], index: 4, kind: input, shape index: {}]
  %s5 = inlined_call_operand.hbm [shape: f32[16,128], index: 5, kind: output, shape index: {}]
  %s6 = sld [smem:[#allocation0]]
  $region54: #{tpu_custom_call.1} parent=0
    _
  %s8 = ssub.s32 1, %s6
  %s9 = scalar_select 0, %s8, %s6
  $region1: #{tpu_custom_call.1} parent=0
    #allocation3 [shape = 'u8[8192]{0}', space=vmem, size = 0x2000, scoped, tag = 'input window, operand 0, single buffered']
    #allocation4 [shape = 's32[1]{0}', space=sflag, size = 0x4, scoped, tag = 'scoped memory for tpu_custom_call.1']
    #allocation5 [shape = 's32[1]{0}', space=sflag, size = 0x4, scoped, tag = 'scoped memory for tpu_custom_call.1']
    #allocation6 [shape = 'u8[65536]{0}', space=vmem, size = 0x10000, scoped, tag = 'input window, operand 1, single buffered']
    #allocation7 [shape = 's32[1]{0}', space=sflag, size = 0x4, scoped, tag = 'scoped memory for tpu_custom_call.1']
    #allocation8 [shape = 'u8[65536]{0}', space=vmem, size = 0x10000, scoped, tag = 'input window, operand 3, single buffered']
    #allocation9 [shape = 'u8[8192]{0}', space=vmem, size = 0x2000, scoped, tag = 'output window, operand 0, single buffered']
    %10 = vsyncpa [#allocation4], 0
    %11 = vsyncpa [#allocation7], 0
    %12 = vsyncpa [#allocation5], 0
    // Predicated region
    $region2: #{tpu_custom_call.1} parent=1 // pred_check
      _
    $region3: #{tpu_custom_call.1} parent=1 // pred_check_branch
      %14 = sbr.rel (0) target = $region5
    $region4: #{tpu_custom_call.1} parent=1 // pred_region
      %s16 = ssub.s32 256, 256
      %17 = vsyncadd [#allocation4], %s16
      %s18 = sshll.u32 [#allocation3], 4
      %s19 = int_to_ptr.vmem [resolvable:$true] %s18
      %24 = dma.hbm_to_vmem [thread:$0]  %s0, 256, %s19, [#allocation4], 128, 128, 8
    $region5: #{tpu_custom_call.1} parent=1 // pred_fallthru
      _
    // Predicated region
    $region6: #{tpu_custom_call.1} parent=1 // pred_check
      _
    $region7: #{tpu_custom_call.1} parent=1 // pred_check_branch
      %26 = sbr.rel (0) target = $region9
    $region8: #{tpu_custom_call.1} parent=1 // pred_region
      %s28 = ssub.s32 2048, 2048
      %29 = vsyncadd [#allocation7], %s28
      %s30 = sshll.u32 [#allocation6], 4
      %s31 = int_to_ptr.vmem [resolvable:$true] %s30
      %36 = dma.hbm_to_vmem [thread:$0]  %s1, 2048, %s31, [#allocation7], 128, 128, 8
    $region9: #{tpu_custom_call.1} parent=1 // pred_fallthru
      _
    // Predicated region
    $region10: #{tpu_custom_call.1} parent=1 // pred_check
      _
    $region11: #{tpu_custom_call.1} parent=1 // pred_check_branch
      %38 = sbr.rel (0) target = $region13
    $region12: #{tpu_custom_call.1} parent=1 // pred_region
      _
    $region13: #{tpu_custom_call.1} parent=1 // pred_fallthru
      _
    // Predicated region
    $region14: #{tpu_custom_call.1} parent=1 // pred_check
      _
    $region15: #{tpu_custom_call.1} parent=1 // pred_check_branch
      %40 = sbr.rel (0) target = $region17
    $region16: #{tpu_custom_call.1} parent=1 // pred_region
      %s42 = ssub.s32 2048, 2048
      %43 = vsyncadd [#allocation7], %s42
      %s44 = sshll.u32 [#allocation8], 4
      %s45 = int_to_ptr.vmem [resolvable:$true] %s44
      %50 = dma.hbm_to_vmem [thread:$0]  %s3, 2048, %s45, [#allocation7], 128, 128, 8
    $region17: #{tpu_custom_call.1} parent=1 // pred_fallthru
      _
    // Predicated region
    $region18: #{tpu_custom_call.1} parent=1 // pred_check
      _
    $region19: #{tpu_custom_call.1} parent=1 // pred_check_branch
      %52 = sbr.rel (0) target = $region21
    $region20: #{tpu_custom_call.1} parent=1 // pred_region
      _
    $region21: #{tpu_custom_call.1} parent=1 // pred_fallthru
      _
    // Predicated region
    $region22: #{tpu_custom_call.1} parent=1 // pred_check
      _
    $region23: #{tpu_custom_call.1} parent=1 // pred_check_branch
      %54 = sbr.rel (0) target = $region25
    $region24: #{tpu_custom_call.1} parent=1 // pred_region
      %55 = dma.done [#allocation4], 256
    $region25: #{tpu_custom_call.1} parent=1 // pred_fallthru
      _
    // Predicated region
    $region26: #{tpu_custom_call.1} parent=1 // pred_check
      _
    $region27: #{tpu_custom_call.1} parent=1 // pred_check_branch
      %57 = sbr.rel (0) target = $region29
    $region28: #{tpu_custom_call.1} parent=1 // pred_region
      %58 = dma.done [#allocation7], 2048
    $region29: #{tpu_custom_call.1} parent=1 // pred_fallthru
      _
    // Predicated region
    $region30: #{tpu_custom_call.1} parent=1 // pred_check
      _
    $region31: #{tpu_custom_call.1} parent=1 // pred_check_branch
      %60 = sbr.rel (0) target = $region33
    $region32: #{tpu_custom_call.1} parent=1 // pred_region
      %61 = dma.done [#allocation7], 2048
    $region33: #{tpu_custom_call.1} parent=1 // pred_fallthru
      _
    %v62 = vld [vmem:[#allocation3] sm:$0xff]
    %v63 = vld [vmem:[#allocation3 + $0x8] sm:$0xff]
    %v64 = vld [vmem:[#allocation6] sm:$0xff]
    %v65 = vld [vmem:[#allocation6 + $0x8] sm:$0xff]
    %v66 = vld [vmem:[#allocation6 + $0x10] sm:$0xff]
    %v67 = vld [vmem:[#allocation6 + $0x18] sm:$0xff]
    %v68 = vld [vmem:[#allocation6 + $0x20] sm:$0xff]
    %v69 = vld [vmem:[#allocation6 + $0x28] sm:$0xff]
    %v70 = vld [vmem:[#allocation6 + $0x30] sm:$0xff]
    %v71 = vld [vmem:[#allocation6 + $0x38] sm:$0xff]
    %v72 = vld [vmem:[#allocation6 + $0x40] sm:$0xff]
    %v73 = vld [vmem:[#allocation6 + $0x48] sm:$0xff]
    %v74 = vld [vmem:[#allocation6 + $0x50] sm:$0xff]
    %v75 = vld [vmem:[#allocation6 + $0x58] sm:$0xff]
    %v76 = vld [vmem:[#allocation6 + $0x60] sm:$0xff]
    %v77 = vld [vmem:[#allocation6 + $0x68] sm:$0xff]
    %v78 = vld [vmem:[#allocation6 + $0x70] sm:$0xff]
    %v79 = vld [vmem:[#allocation6 + $0x78] sm:$0xff]
    %v80 = vld [vmem:[%s2] sm:$0x1]
    %v82 = vlaneseq
    %v83 = vshrl.u32 %v82, 7
    %v84 = vsub.s32 0, %v83
    %v85 = vrot.slane %v80, %v84
    %87 = vmatprep.subr.mxu0 0.0
    %v88 = vand.u32 %v64, 4294901760
    %89 = vmatpush1.msra.mxu0 %v88
    %90 = vmatprep.subr.mxu0 0.0
    %v91 = vand.u32 %v65, 4294901760
    %92 = vmatpush1.msra.mxu0 %v91
    %93 = vmatprep.subr.mxu0 0.0
    %v94 = vand.u32 %v66, 4294901760
    %95 = vmatpush1.msra.mxu0 %v94
    %96 = vmatprep.subr.mxu0 0.0
    %v97 = vand.u32 %v67, 4294901760
    %98 = vmatpush1.msra.mxu0 %v97
    %99 = vmatprep.subr.mxu0 0.0
    %v100 = vand.u32 %v68, 4294901760
    %101 = vmatpush1.msra.mxu0 %v100
    %102 = vmatprep.subr.mxu0 0.0
    %v103 = vand.u32 %v69, 4294901760
    %104 = vmatpush1.msra.mxu0 %v103
    %105 = vmatprep.subr.mxu0 0.0
    %v106 = vand.u32 %v70, 4294901760
    %107 = vmatpush1.msra.mxu0 %v106
    %108 = vmatprep.subr.mxu0 0.0
    %v109 = vand.u32 %v71, 4294901760
    %110 = vmatpush1.msra.mxu0 %v109
    %111 = vmatprep.subr.mxu0 0.0
    %v112 = vand.u32 %v72, 4294901760
    %113 = vmatpush1.msra.mxu0 %v112
    %114 = vmatprep.subr.mxu0 0.0
    %v115 = vand.u32 %v73, 4294901760
    %116 = vmatpush1.msra.mxu0 %v115
    %117 = vmatprep.subr.mxu0 0.0
    %v118 = vand.u32 %v74, 4294901760
    %119 = vmatpush1.msra.mxu0 %v118
    %120 = vmatprep.subr.mxu0 0.0
    %v121 = vand.u32 %v75, 4294901760
    %122 = vmatpush1.msra.mxu0 %v121
    %123 = vmatprep.subr.mxu0 0.0
    %v124 = vand.u32 %v76, 4294901760
    %125 = vmatpush1.msra.mxu0 %v124
    %126 = vmatprep.subr.mxu0 0.0
    %v127 = vand.u32 %v77, 4294901760
    %128 = vmatpush1.msra.mxu0 %v127
    %129 = vmatprep.subr.mxu0 0.0
    %v130 = vand.u32 %v78, 4294901760
    %131 = vmatpush1.msra.mxu0 %v130
    %132 = vmatprep.subr.mxu0 0.0
    %v133 = vand.u32 %v79, 4294901760
    %134 = vmatpush1.msra.mxu0 %v133
    %135 = vmatprep.subr.mxu0 0.0
    %136 = vmatpush1.msra.mxu0 0.0
    %137 = vmatprep.subr.mxu0 0.0
    %138 = vmatpush1.msra.mxu0 0.0
    %139 = vmatprep.subr.mxu0 0.0
    %140 = vmatpush1.msra.mxu0 0.0
    %141 = vmatprep.subr.mxu0 0.0
    %142 = vmatpush1.msra.mxu0 0.0
    %143 = vmatprep.subr.mxu0 0.0
    %144 = vmatpush1.msra.mxu0 0.0
    %145 = vmatprep.subr.mxu0 0.0
    %146 = vmatpush1.msra.mxu0 0.0
    %147 = vmatprep.subr.mxu0 0.0
    %148 = vmatpush1.msra.mxu0 0.0
    %149 = vmatprep.subr.mxu0 0.0
    %150 = vmatpush1.msra.mxu0 0.0
    %151 = vmatprep.subr.mxu0 0.0
    %152 = vmatpush1.msra.mxu0 0.0
    %153 = vmatprep.subr.mxu0 0.0
    %154 = vmatpush1.msra.mxu0 0.0
    %155 = vmatprep.subr.mxu0 0.0
    %156 = vmatpush1.msra.mxu0 0.0
    %157 = vmatprep.subr.mxu0 0.0
    %158 = vmatpush1.msra.mxu0 0.0
    %159 = vmatprep.subr.mxu0 0.0
    %160 = vmatpush1.msra.mxu0 0.0
    %161 = vmatprep.subr.mxu0 0.0
    %162 = vmatpush1.msra.mxu0 0.0
    %163 = vmatprep.subr.mxu0 0.0
    %164 = vmatpush1.msra.mxu0 0.0
    %165 = vmatprep.subr.mxu0 0.0
    %166 = vmatpush1.msra.mxu0 0.0
    %167 = vmatprep.mubr.f32.mxu0 0.0
    %v168 = vand.u32 %v62, 4294901760
    %v169 = vsub.f32 %v62, %v168
    %v170 = vand.u32 %v169, 4294901760
    %v171 = vsub.f32 %v169, %v170
    %v172 = vand.u32 %v171, 4294901760
    %173 = vmatmul.mubr.f32.gmra.mrb[0].mxu0 %v172
    %v174 = vpop.f32.mrb[0].mxu0
    %v175 = vadd.f32 %v85, %v174
    %v176 = vpop.f32.mrb[0].mxu0
    %177 = vmatprep.mubr.f32.mxu0 0.0
    %v178 = vand.u32 %v63, 4294901760
    %v179 = vsub.f32 %v63, %v178
    %v180 = vand.u32 %v179, 4294901760
    %v181 = vsub.f32 %v179, %v180
    %v182 = vand.u32 %v181, 4294901760
    %183 = vmatmul.mubr.f32.gmra.mrb[0].mxu0 %v182
    %v184 = vpop.f32.mrb[0].mxu0
    %v185 = vadd.f32 %v85, %v184
    %v186 = vpop.f32.mrb[0].mxu0
    %187 = vdwg.mxu0
    %188 = vmatprep.subr.mxu0 0.0
    %v189 = vand.u32 %v64, 4294901760
    %v190 = vsub.f32 %v64, %v189
    %v191 = vand.u32 %v190, 4294901760
    %v192 = vsub.f32 %v190, %v191
    %v193 = vand.u32 %v192, 4294901760
    %194 = vmatpush1.msra.mxu0 %v193
    %195 = vmatprep.subr.mxu0 0.0
    %v196 = vand.u32 %v65, 4294901760
    %v197 = vsub.f32 %v65, %v196
    %v198 = vand.u32 %v197, 4294901760
    %v199 = vsub.f32 %v197, %v198
    %v200 = vand.u32 %v199, 4294901760
    %201 = vmatpush1.msra.mxu0 %v200
    %202 = vmatprep.subr.mxu0 0.0
    %v203 = vand.u32 %v66, 4294901760
    %v204 = vsub.f32 %v66, %v203
    %v205 = vand.u32 %v204, 4294901760
    %v206 = vsub.f32 %v204, %v205
    %v207 = vand.u32 %v206, 4294901760
    %208 = vmatpush1.msra.mxu0 %v207
    %209 = vmatprep.subr.mxu0 0.0
    %v210 = vand.u32 %v67, 4294901760
    %v211 = vsub.f32 %v67, %v210
    %v212 = vand.u32 %v211, 4294901760
    %v213 = vsub.f32 %v211, %v212
    %v214 = vand.u32 %v213, 4294901760
    %215 = vmatpush1.msra.mxu0 %v214
    %216 = vmatprep.subr.mxu0 0.0
    %v217 = vand.u32 %v68, 4294901760
    %v218 = vsub.f32 %v68, %v217
    %v219 = vand.u32 %v218, 4294901760
    %v220 = vsub.f32 %v218, %v219
    %v221 = vand.u32 %v220, 4294901760
    %222 = vmatpush1.msra.mxu0 %v221
    %223 = vmatprep.subr.mxu0 0.0
    %v224 = vand.u32 %v69, 4294901760
    %v225 = vsub.f32 %v69, %v224
    %v226 = vand.u32 %v225, 4294901760
    %v227 = vsub.f32 %v225, %v226
    %v228 = vand.u32 %v227, 4294901760
    %229 = vmatpush1.msra.mxu0 %v228
    %230 = vmatprep.subr.mxu0 0.0
    %v231 = vand.u32 %v70, 4294901760
    %v232 = vsub.f32 %v70, %v231
    %v233 = vand.u32 %v232, 4294901760
    %v234 = vsub.f32 %v232, %v233
    %v235 = vand.u32 %v234, 4294901760
    %236 = vmatpush1.msra.mxu0 %v235
    %237 = vmatprep.subr.mxu0 0.0
    %v238 = vand.u32 %v71, 4294901760
    %v239 = vsub.f32 %v71, %v238
    %v240 = vand.u32 %v239, 4294901760
    %v241 = vsub.f32 %v239, %v240
    %v242 = vand.u32 %v241, 4294901760
    %243 = vmatpush1.msra.mxu0 %v242
    %244 = vmatprep.subr.mxu0 0.0
    %v245 = vand.u32 %v72, 4294901760
    %v246 = vsub.f32 %v72, %v245
    %v247 = vand.u32 %v246, 4294901760
    %v248 = vsub.f32 %v246, %v247
    %v249 = vand.u32 %v248, 4294901760
    %250 = vmatpush1.msra.mxu0 %v249
    %251 = vmatprep.subr.mxu0 0.0
    %v252 = vand.u32 %v73, 4294901760
    %v253 = vsub.f32 %v73, %v252
    %v254 = vand.u32 %v253, 4294901760
    %v255 = vsub.f32 %v253, %v254
    %v256 = vand.u32 %v255, 4294901760
    %257 = vmatpush1.msra.mxu0 %v256
    %258 = vmatprep.subr.mxu0 0.0
    %v259 = vand.u32 %v74, 4294901760
    %v260 = vsub.f32 %v74, %v259
    %v261 = vand.u32 %v260, 4294901760
    %v262 = vsub.f32 %v260, %v261
    %v263 = vand.u32 %v262, 4294901760
    %264 = vmatpush1.msra.mxu0 %v263
    %265 = vmatprep.subr.mxu0 0.0
    %v266 = vand.u32 %v75, 4294901760
    %v267 = vsub.f32 %v75, %v266
    %v268 = vand.u32 %v267, 4294901760
    %v269 = vsub.f32 %v267, %v268
    %v270 = vand.u32 %v269, 4294901760
    %271 = vmatpush1.msra.mxu0 %v270
    %272 = vmatprep.subr.mxu0 0.0
    %v273 = vand.u32 %v76, 4294901760
    %v274 = vsub.f32 %v76, %v273
    %v275 = vand.u32 %v274, 4294901760
    %v276 = vsub.f32 %v274, %v275
    %v277 = vand.u32 %v276, 4294901760
    %278 = vmatpush1.msra.mxu0 %v277
    %279 = vmatprep.subr.mxu0 0.0
    %v280 = vand.u32 %v77, 4294901760
    %v281 = vsub.f32 %v77, %v280
    %v282 = vand.u32 %v281, 4294901760
    %v283 = vsub.f32 %v281, %v282
    %v284 = vand.u32 %v283, 4294901760
    %285 = vmatpush1.msra.mxu0 %v284
    %286 = vmatprep.subr.mxu0 0.0
    %v287 = vand.u32 %v78, 4294901760
    %v288 = vsub.f32 %v78, %v287
    %v289 = vand.u32 %v288, 4294901760
    %v290 = vsub.f32 %v288, %v289
    %v291 = vand.u32 %v290, 4294901760
    %292 = vmatpush1.msra.mxu0 %v291
    %293 = vmatprep.subr.mxu0 0.0
    %v294 = vand.u32 %v79, 4294901760
    %v295 = vsub.f32 %v79, %v294
    %v296 = vand.u32 %v295, 4294901760
    %v297 = vsub.f32 %v295, %v296
    %v298 = vand.u32 %v297, 4294901760
    %299 = vmatpush1.msra.mxu0 %v298
    %300 = vmatprep.subr.mxu0 0.0
    %301 = vmatpush1.msra.mxu0 0.0
    %302 = vmatprep.subr.mxu0 0.0
    %303 = vmatpush1.msra.mxu0 0.0
    %304 = vmatprep.subr.mxu0 0.0
    %305 = vmatpush1.msra.mxu0 0.0
    %306 = vmatprep.subr.mxu0 0.0
    %307 = vmatpush1.msra.mxu0 0.0
    %308 = vmatprep.subr.mxu0 0.0
    %309 = vmatpush1.msra.mxu0 0.0
    %310 = vmatprep.subr.mxu0 0.0
    %311 = vmatpush1.msra.mxu0 0.0
    %312 = vmatprep.subr.mxu0 0.0
    %313 = vmatpush1.msra.mxu0 0.0
    %314 = vmatprep.subr.mxu0 0.0
    %315 = vmatpush1.msra.mxu0 0.0
    %316 = vmatprep.subr.mxu0 0.0
    %317 = vmatpush1.msra.mxu0 0.0
    %318 = vmatprep.subr.mxu0 0.0
    %319 = vmatpush1.msra.mxu0 0.0
    %320 = vmatprep.subr.mxu0 0.0
    %321 = vmatpush1.msra.mxu0 0.0
    %322 = vmatprep.subr.mxu0 0.0
    %323 = vmatpush1.msra.mxu0 0.0
    %324 = vmatprep.subr.mxu0 0.0
    %325 = vmatpush1.msra.mxu0 0.0
    %326 = vmatprep.subr.mxu0 0.0
    %327 = vmatpush1.msra.mxu0 0.0
    %328 = vmatprep.subr.mxu0 0.0
    %329 = vmatpush1.msra.mxu0 0.0
    %330 = vmatprep.subr.mxu0 0.0
    %331 = vmatpush1.msra.mxu0 0.0
    %332 = vmatprep.mubr.f32.mxu0 0.0
    %v333 = vand.u32 %v62, 4294901760
    %334 = vmatmul.mubr.f32.gmra.mrb[0].mxu0 %v333
    %v335 = vpop.f32.mrb[0].mxu0
    %v336 = vadd.f32 %v175, %v335
    %v337 = vpop.f32.mrb[0].mxu0
    %338 = vmatprep.mubr.f32.mxu0 0.0
    %v339 = vand.u32 %v63, 4294901760
    %340 = vmatmul.mubr.f32.gmra.mrb[0].mxu0 %v339
    %v341 = vpop.f32.mrb[0].mxu0
    %v342 = vadd.f32 %v185, %v341
    %v343 = vpop.f32.mrb[0].mxu0
    %344 = vdwg.mxu0
    %345 = vmatprep.subr.mxu0 0.0
    %v346 = vand.u32 %v64, 4294901760
    %v347 = vsub.f32 %v64, %v346
    %348 = vmatpush1.msra.mxu0 %v347
    %349 = vmatprep.subr.mxu0 0.0
    %v350 = vand.u32 %v65, 4294901760
    %v351 = vsub.f32 %v65, %v350
    %352 = vmatpush1.msra.mxu0 %v351
    %353 = vmatprep.subr.mxu0 0.0
    %v354 = vand.u32 %v66, 4294901760
    %v355 = vsub.f32 %v66, %v354
    %356 = vmatpush1.msra.mxu0 %v355
    %357 = vmatprep.subr.mxu0 0.0
    %v358 = vand.u32 %v67, 4294901760
    %v359 = vsub.f32 %v67, %v358
    %360 = vmatpush1.msra.mxu0 %v359
    %361 = vmatprep.subr.mxu0 0.0
    %v362 = vand.u32 %v68, 4294901760
    %v363 = vsub.f32 %v68, %v362
    %364 = vmatpush1.msra.mxu0 %v363
    %365 = vmatprep.subr.mxu0 0.0
    %v366 = vand.u32 %v69, 4294901760
    %v367 = vsub.f32 %v69, %v366
    %368 = vmatpush1.msra.mxu0 %v367
    %369 = vmatprep.subr.mxu0 0.0
    %v370 = vand.u32 %v70, 4294901760
    %v371 = vsub.f32 %v70, %v370
    %372 = vmatpush1.msra.mxu0 %v371
    %373 = vmatprep.subr.mxu0 0.0
    %v374 = vand.u32 %v71, 4294901760
    %v375 = vsub.f32 %v71, %v374
    %376 = vmatpush1.msra.mxu0 %v375
    %377 = vmatprep.subr.mxu0 0.0
    %v378 = vand.u32 %v72, 4294901760
    %v379 = vsub.f32 %v72, %v378
    %380 = vmatpush1.msra.mxu0 %v379
    %381 = vmatprep.subr.mxu0 0.0
    %v382 = vand.u32 %v73, 4294901760
    %v383 = vsub.f32 %v73, %v382
    %384 = vmatpush1.msra.mxu0 %v383
    %385 = vmatprep.subr.mxu0 0.0
    %v386 = vand.u32 %v74, 4294901760
    %v387 = vsub.f32 %v74, %v386
    %388 = vmatpush1.msra.mxu0 %v387
    %389 = vmatprep.subr.mxu0 0.0
    %v390 = vand.u32 %v75, 4294901760
    %v391 = vsub.f32 %v75, %v390
    %392 = vmatpush1.msra.mxu0 %v391
    %393 = vmatprep.subr.mxu0 0.0
    %v394 = vand.u32 %v76, 4294901760
    %v395 = vsub.f32 %v76, %v394
    %396 = vmatpush1.msra.mxu0 %v395
    %397 = vmatprep.subr.mxu0 0.0
    %v398 = vand.u32 %v77, 4294901760
    %v399 = vsub.f32 %v77, %v398
    %400 = vmatpush1.msra.mxu0 %v399
    %401 = vmatprep.subr.mxu0 0.0
    %v402 = vand.u32 %v78, 4294901760
    %v403 = vsub.f32 %v78, %v402
    %404 = vmatpush1.msra.mxu0 %v403
    %405 = vmatprep.subr.mxu0 0.0
    %v406 = vand.u32 %v79, 4294901760
    %v407 = vsub.f32 %v79, %v406
    %408 = vmatpush1.msra.mxu0 %v407
    %409 = vmatprep.subr.mxu0 0.0
    %410 = vmatpush1.msra.mxu0 0.0
    %411 = vmatprep.subr.mxu0 0.0
    %412 = vmatpush1.msra.mxu0 0.0
    %413 = vmatprep.subr.mxu0 0.0
    %414 = vmatpush1.msra.mxu0 0.0
    %415 = vmatprep.subr.mxu0 0.0
    %416 = vmatpush1.msra.mxu0 0.0
    %417 = vmatprep.subr.mxu0 0.0
    %418 = vmatpush1.msra.mxu0 0.0
    %419 = vmatprep.subr.mxu0 0.0
    %420 = vmatpush1.msra.mxu0 0.0
    %421 = vmatprep.subr.mxu0 0.0
    %422 = vmatpush1.msra.mxu0 0.0
    %423 = vmatprep.subr.mxu0 0.0
    %424 = vmatpush1.msra.mxu0 0.0
    %425 = vmatprep.subr.mxu0 0.0
    %426 = vmatpush1.msra.mxu0 0.0
    %427 = vmatprep.subr.mxu0 0.0
    %428 = vmatpush1.msra.mxu0 0.0
    %429 = vmatprep.subr.mxu0 0.0
    %430 = vmatpush1.msra.mxu0 0.0
    %431 = vmatprep.subr.mxu0 0.0
    %432 = vmatpush1.msra.mxu0 0.0
    %433 = vmatprep.subr.mxu0 0.0
    %434 = vmatpush1.msra.mxu0 0.0
    %435 = vmatprep.subr.mxu0 0.0
    %436 = vmatpush1.msra.mxu0 0.0
    %437 = vmatprep.subr.mxu0 0.0
    %438 = vmatpush1.msra.mxu0 0.0
    %439 = vmatprep.subr.mxu0 0.0
    %440 = vmatpush1.msra.mxu0 0.0
    %441 = vmatprep.mubr.f32.mxu0 0.0
    %v442 = vand.u32 %v62, 4294901760
    %v443 = vsub.f32 %v62, %v442
    %444 = vmatmul.mubr.f32.gmra.mrb[0].mxu0 %v443
    %v445 = vpop.f32.mrb[0].mxu0
    %v446 = vadd.f32 %v336, %v445
    %v447 = vpop.f32.mrb[0].mxu0
    %448 = vmatprep.mubr.f32.mxu0 0.0
    %v449 = vand.u32 %v63, 4294901760
    %v450 = vsub.f32 %v63, %v449
    %451 = vmatmul.mubr.f32.gmra.mrb[0].mxu0 %v450
    %v452 = vpop.f32.mrb[0].mxu0
    %v453 = vadd.f32 %v342, %v452
    %v454 = vpop.f32.mrb[0].mxu0
    %455 = vdwg.mxu0
    %456 = vmatprep.subr.mxu0 0.0
    %v457 = vand.u32 %v64, 4294901760
    %458 = vmatpush1.msra.mxu0 %v457
    %459 = vmatprep.subr.mxu0 0.0
    %v460 = vand.u32 %v65, 4294901760
    %461 = vmatpush1.msra.mxu0 %v460
    %462 = vmatprep.subr.mxu0 0.0
    %v463 = vand.u32 %v66, 4294901760
    %464 = vmatpush1.msra.mxu0 %v463
    %465 = vmatprep.subr.mxu0 0.0
    %v466 = vand.u32 %v67, 4294901760
    %467 = vmatpush1.msra.mxu0 %v466
    %468 = vmatprep.subr.mxu0 0.0
    %v469 = vand.u32 %v68, 4294901760
    %470 = vmatpush1.msra.mxu0 %v469
    %471 = vmatprep.subr.mxu0 0.0
    %v472 = vand.u32 %v69, 4294901760
    %473 = vmatpush1.msra.mxu0 %v472
    %474 = vmatprep.subr.mxu0 0.0
    %v475 = vand.u32 %v70, 4294901760
    %476 = vmatpush1.msra.mxu0 %v475
    %477 = vmatprep.subr.mxu0 0.0
    %v478 = vand.u32 %v71, 4294901760
    %479 = vmatpush1.msra.mxu0 %v478
    %480 = vmatprep.subr.mxu0 0.0
    %v481 = vand.u32 %v72, 4294901760
    %482 = vmatpush1.msra.mxu0 %v481
    %483 = vmatprep.subr.mxu0 0.0
    %v484 = vand.u32 %v73, 4294901760
    %485 = vmatpush1.msra.mxu0 %v484
    %486 = vmatprep.subr.mxu0 0.0
    %v487 = vand.u32 %v74, 4294901760
    %488 = vmatpush1.msra.mxu0 %v487
    %489 = vmatprep.subr.mxu0 0.0
    %v490 = vand.u32 %v75, 4294901760
    %491 = vmatpush1.msra.mxu0 %v490
    %492 = vmatprep.subr.mxu0 0.0
    %v493 = vand.u32 %v76, 4294901760
    %494 = vmatpush1.msra.mxu0 %v493
    %495 = vmatprep.subr.mxu0 0.0
    %v496 = vand.u32 %v77, 4294901760
    %497 = vmatpush1.msra.mxu0 %v496
    %498 = vmatprep.subr.mxu0 0.0
    %v499 = vand.u32 %v78, 4294901760
    %500 = vmatpush1.msra.mxu0 %v499
    %501 = vmatprep.subr.mxu0 0.0
    %v502 = vand.u32 %v79, 4294901760
    %503 = vmatpush1.msra.mxu0 %v502
    %504 = vmatprep.subr.mxu0 0.0
    %505 = vmatpush1.msra.mxu0 0.0
    %506 = vmatprep.subr.mxu0 0.0
    %507 = vmatpush1.msra.mxu0 0.0
    %508 = vmatprep.subr.mxu0 0.0
    %509 = vmatpush1.msra.mxu0 0.0
    %510 = vmatprep.subr.mxu0 0.0
    %511 = vmatpush1.msra.mxu0 0.0
    %512 = vmatprep.subr.mxu0 0.0
    %513 = vmatpush1.msra.mxu0 0.0
    %514 = vmatprep.subr.mxu0 0.0
    %515 = vmatpush1.msra.mxu0 0.0
    %516 = vmatprep.subr.mxu0 0.0
    %517 = vmatpush1.msra.mxu0 0.0
    %518 = vmatprep.subr.mxu0 0.0
    %519 = vmatpush1.msra.mxu0 0.0
    %520 = vmatprep.subr.mxu0 0.0
    %521 = vmatpush1.msra.mxu0 0.0
    %522 = vmatprep.subr.mxu0 0.0
    %523 = vmatpush1.msra.mxu0 0.0
    %524 = vmatprep.subr.mxu0 0.0
    %525 = vmatpush1.msra.mxu0 0.0
    %526 = vmatprep.subr.mxu0 0.0
    %527 = vmatpush1.msra.mxu0 0.0
    %528 = vmatprep.subr.mxu0 0.0
    %529 = vmatpush1.msra.mxu0 0.0
    %530 = vmatprep.subr.mxu0 0.0
    %531 = vmatpush1.msra.mxu0 0.0
    %532 = vmatprep.subr.mxu0 0.0
    %533 = vmatpush1.msra.mxu0 0.0
    %534 = vmatprep.subr.mxu0 0.0
    %535 = vmatpush1.msra.mxu0 0.0
    %536 = vmatprep.mubr.f32.mxu0 0.0
    %v537 = vand.u32 %v62, 4294901760
    %v538 = vsub.f32 %v62, %v537
    %v539 = vand.u32 %v538, 4294901760
    %540 = vmatmul.mubr.f32.gmra.mrb[0].mxu0 %v539
    %v541 = vpop.f32.mrb[0].mxu0
    %v542 = vadd.f32 %v446, %v541
    %v543 = vpop.f32.mrb[0].mxu0
    %544 = vmatprep.mubr.f32.mxu0 0.0
    %v545 = vand.u32 %v63, 4294901760
    %v546 = vsub.f32 %v63, %v545
    %v547 = vand.u32 %v546, 4294901760
    %548 = vmatmul.mubr.f32.gmra.mrb[0].mxu0 %v547
    %v549 = vpop.f32.mrb[0].mxu0
    %v550 = vadd.f32 %v453, %v549
    %v551 = vpop.f32.mrb[0].mxu0
    %552 = vdwg.mxu0
    %553 = vmatprep.subr.mxu0 0.0
    %v554 = vand.u32 %v64, 4294901760
    %v555 = vsub.f32 %v64, %v554
    %v556 = vand.u32 %v555, 4294901760
    %557 = vmatpush1.msra.mxu0 %v556
    %558 = vmatprep.subr.mxu0 0.0
    %v559 = vand.u32 %v65, 4294901760
    %v560 = vsub.f32 %v65, %v559
    %v561 = vand.u32 %v560, 4294901760
    %562 = vmatpush1.msra.mxu0 %v561
    %563 = vmatprep.subr.mxu0 0.0
    %v564 = vand.u32 %v66, 4294901760
    %v565 = vsub.f32 %v66, %v564
    %v566 = vand.u32 %v565, 4294901760
    %567 = vmatpush1.msra.mxu0 %v566
    %568 = vmatprep.subr.mxu0 0.0
    %v569 = vand.u32 %v67, 4294901760
    %v570 = vsub.f32 %v67, %v569
    %v571 = vand.u32 %v570, 4294901760
    %572 = vmatpush1.msra.mxu0 %v571
    %573 = vmatprep.subr.mxu0 0.0
    %v574 = vand.u32 %v68, 4294901760
    %v575 = vsub.f32 %v68, %v574
    %v576 = vand.u32 %v575, 4294901760
    %577 = vmatpush1.msra.mxu0 %v576
    %578 = vmatprep.subr.mxu0 0.0
    %v579 = vand.u32 %v69, 4294901760
    %v580 = vsub.f32 %v69, %v579
    %v581 = vand.u32 %v580, 4294901760
    %582 = vmatpush1.msra.mxu0 %v581
    %583 = vmatprep.subr.mxu0 0.0
    %v584 = vand.u32 %v70, 4294901760
    %v585 = vsub.f32 %v70, %v584
    %v586 = vand.u32 %v585, 4294901760
    %587 = vmatpush1.msra.mxu0 %v586
    %588 = vmatprep.subr.mxu0 0.0
    %v589 = vand.u32 %v71, 4294901760
    %v590 = vsub.f32 %v71, %v589
    %v591 = vand.u32 %v590, 4294901760
    %592 = vmatpush1.msra.mxu0 %v591
    %593 = vmatprep.subr.mxu0 0.0
    %v594 = vand.u32 %v72, 4294901760
    %v595 = vsub.f32 %v72, %v594
    %v596 = vand.u32 %v595, 4294901760
    %597 = vmatpush1.msra.mxu0 %v596
    %598 = vmatprep.subr.mxu0 0.0
    %v599 = vand.u32 %v73, 4294901760
    %v600 = vsub.f32 %v73, %v599
    %v601 = vand.u32 %v600, 4294901760
    %602 = vmatpush1.msra.mxu0 %v601
    %603 = vmatprep.subr.mxu0 0.0
    %v604 = vand.u32 %v74, 4294901760
    %v605 = vsub.f32 %v74, %v604
    %v606 = vand.u32 %v605, 4294901760
    %607 = vmatpush1.msra.mxu0 %v606
    %608 = vmatprep.subr.mxu0 0.0
    %v609 = vand.u32 %v75, 4294901760
    %v610 = vsub.f32 %v75, %v609
    %v611 = vand.u32 %v610, 4294901760
    %612 = vmatpush1.msra.mxu0 %v611
    %613 = vmatprep.subr.mxu0 0.0
    %v614 = vand.u32 %v76, 4294901760
    %v615 = vsub.f32 %v76, %v614
    %v616 = vand.u32 %v615, 4294901760
    %617 = vmatpush1.msra.mxu0 %v616
    %618 = vmatprep.subr.mxu0 0.0
    %v619 = vand.u32 %v77, 4294901760
    %v620 = vsub.f32 %v77, %v619
    %v621 = vand.u32 %v620, 4294901760
    %622 = vmatpush1.msra.mxu0 %v621
    %623 = vmatprep.subr.mxu0 0.0
    %v624 = vand.u32 %v78, 4294901760
    %v625 = vsub.f32 %v78, %v624
    %v626 = vand.u32 %v625, 4294901760
    %627 = vmatpush1.msra.mxu0 %v626
    %628 = vmatprep.subr.mxu0 0.0
    %v629 = vand.u32 %v79, 4294901760
    %v630 = vsub.f32 %v79, %v629
    %v631 = vand.u32 %v630, 4294901760
    %632 = vmatpush1.msra.mxu0 %v631
    %633 = vmatprep.subr.mxu0 0.0
    %634 = vmatpush1.msra.mxu0 0.0
    %635 = vmatprep.subr.mxu0 0.0
    %636 = vmatpush1.msra.mxu0 0.0
    %637 = vmatprep.subr.mxu0 0.0
    %638 = vmatpush1.msra.mxu0 0.0
    %639 = vmatprep.subr.mxu0 0.0
    %640 = vmatpush1.msra.mxu0 0.0
    %641 = vmatprep.subr.mxu0 0.0
    %642 = vmatpush1.msra.mxu0 0.0
    %643 = vmatprep.subr.mxu0 0.0
    %644 = vmatpush1.msra.mxu0 0.0
    %645 = vmatprep.subr.mxu0 0.0
    %646 = vmatpush1.msra.mxu0 0.0
    %647 = vmatprep.subr.mxu0 0.0
    %648 = vmatpush1.msra.mxu0 0.0
    %649 = vmatprep.subr.mxu0 0.0
    %650 = vmatpush1.msra.mxu0 0.0
    %651 = vmatprep.subr.mxu0 0.0
    %652 = vmatpush1.msra.mxu0 0.0
    %653 = vmatprep.subr.mxu0 0.0
    %654 = vmatpush1.msra.mxu0 0.0
    %655 = vmatprep.subr.mxu0 0.0
    %656 = vmatpush1.msra.mxu0 0.0
    %657 = vmatprep.subr.mxu0 0.0
    %658 = vmatpush1.msra.mxu0 0.0
    %659 = vmatprep.subr.mxu0 0.0
    %660 = vmatpush1.msra.mxu0 0.0
    %661 = vmatprep.subr.mxu0 0.0
    %662 = vmatpush1.msra.mxu0 0.0
    %663 = vmatprep.subr.mxu0 0.0
    %664 = vmatpush1.msra.mxu0 0.0
    %665 = vmatprep.mubr.f32.mxu0 0.0
    %v666 = vand.u32 %v62, 4294901760
    %667 = vmatmul.mubr.f32.gmra.mrb[0].mxu0 %v666
    %v668 = vpop.f32.mrb[0].mxu0
    %v669 = vadd.f32 %v542, %v668
    %v670 = vpop.f32.mrb[0].mxu0
    %671 = vmatprep.mubr.f32.mxu0 0.0
    %v672 = vand.u32 %v63, 4294901760
    %673 = vmatmul.mubr.f32.gmra.mrb[0].mxu0 %v672
    %v674 = vpop.f32.mrb[0].mxu0
    %v675 = vadd.f32 %v550, %v674
    %v676 = vpop.f32.mrb[0].mxu0
    %677 = vdwg.mxu0
    %678 = vmatprep.subr.mxu0 0.0
    %v679 = vand.u32 %v64, 4294901760
    %680 = vmatpush1.msra.mxu0 %v679
    %681 = vmatprep.subr.mxu0 0.0
    %v682 = vand.u32 %v65, 4294901760
    %683 = vmatpush1.msra.mxu0 %v682
    %684 = vmatprep.subr.mxu0 0.0
    %v685 = vand.u32 %v66, 4294901760
    %686 = vmatpush1.msra.mxu0 %v685
    %687 = vmatprep.subr.mxu0 0.0
    %v688 = vand.u32 %v67, 4294901760
    %689 = vmatpush1.msra.mxu0 %v688
    %690 = vmatprep.subr.mxu0 0.0
    %v691 = vand.u32 %v68, 4294901760
    %692 = vmatpush1.msra.mxu0 %v691
    %693 = vmatprep.subr.mxu0 0.0
    %v694 = vand.u32 %v69, 4294901760
    %695 = vmatpush1.msra.mxu0 %v694
    %696 = vmatprep.subr.mxu0 0.0
    %v697 = vand.u32 %v70, 4294901760
    %698 = vmatpush1.msra.mxu0 %v697
    %699 = vmatprep.subr.mxu0 0.0
    %v700 = vand.u32 %v71, 4294901760
    %701 = vmatpush1.msra.mxu0 %v700
    %702 = vmatprep.subr.mxu0 0.0
    %v703 = vand.u32 %v72, 4294901760
    %704 = vmatpush1.msra.mxu0 %v703
    %705 = vmatprep.subr.mxu0 0.0
    %v706 = vand.u32 %v73, 4294901760
    %707 = vmatpush1.msra.mxu0 %v706
    %708 = vmatprep.subr.mxu0 0.0
    %v709 = vand.u32 %v74, 4294901760
    %710 = vmatpush1.msra.mxu0 %v709
    %711 = vmatprep.subr.mxu0 0.0
    %v712 = vand.u32 %v75, 4294901760
    %713 = vmatpush1.msra.mxu0 %v712
    %714 = vmatprep.subr.mxu0 0.0
    %v715 = vand.u32 %v76, 4294901760
    %716 = vmatpush1.msra.mxu0 %v715
    %717 = vmatprep.subr.mxu0 0.0
    %v718 = vand.u32 %v77, 4294901760
    %719 = vmatpush1.msra.mxu0 %v718
    %720 = vmatprep.subr.mxu0 0.0
    %v721 = vand.u32 %v78, 4294901760
    %722 = vmatpush1.msra.mxu0 %v721
    %723 = vmatprep.subr.mxu0 0.0
    %v724 = vand.u32 %v79, 4294901760
    %725 = vmatpush1.msra.mxu0 %v724
    %726 = vmatprep.subr.mxu0 0.0
    %727 = vmatpush1.msra.mxu0 0.0
    %728 = vmatprep.subr.mxu0 0.0
    %729 = vmatpush1.msra.mxu0 0.0
    %730 = vmatprep.subr.mxu0 0.0
    %731 = vmatpush1.msra.mxu0 0.0
    %732 = vmatprep.subr.mxu0 0.0
    %733 = vmatpush1.msra.mxu0 0.0
    %734 = vmatprep.subr.mxu0 0.0
    %735 = vmatpush1.msra.mxu0 0.0
    %736 = vmatprep.subr.mxu0 0.0
    %737 = vmatpush1.msra.mxu0 0.0
    %738 = vmatprep.subr.mxu0 0.0
    %739 = vmatpush1.msra.mxu0 0.0
    %740 = vmatprep.subr.mxu0 0.0
    %741 = vmatpush1.msra.mxu0 0.0
    %742 = vmatprep.subr.mxu0 0.0
    %743 = vmatpush1.msra.mxu0 0.0
    %744 = vmatprep.subr.mxu0 0.0
    %745 = vmatpush1.msra.mxu0 0.0
    %746 = vmatprep.subr.mxu0 0.0
    %747 = vmatpush1.msra.mxu0 0.0
    %748 = vmatprep.subr.mxu0 0.0
    %749 = vmatpush1.msra.mxu0 0.0
    %750 = vmatprep.subr.mxu0 0.0
    %751 = vmatpush1.msra.mxu0 0.0
    %752 = vmatprep.subr.mxu0 0.0
    %753 = vmatpush1.msra.mxu0 0.0
    %754 = vmatprep.subr.mxu0 0.0
    %755 = vmatpush1.msra.mxu0 0.0
    %756 = vmatprep.subr.mxu0 0.0
    %757 = vmatpush1.msra.mxu0 0.0
    %758 = vmatprep.mubr.f32.mxu0 0.0
    %v759 = vand.u32 %v62, 4294901760
    %760 = vmatmul.mubr.f32.gmra.mrb[0].mxu0 %v759
    %v761 = vpop.f32.mrb[0].mxu0
    %v762 = vadd.f32 %v669, %v761
    %v763 = vpop.f32.mrb[0].mxu0
    %764 = vmatprep.mubr.f32.mxu0 0.0
    %v765 = vand.u32 %v63, 4294901760
    %766 = vmatmul.mubr.f32.gmra.mrb[0].mxu0 %v765
    %v767 = vpop.f32.mrb[0].mxu0
    %v768 = vadd.f32 %v675, %v767
    %v769 = vpop.f32.mrb[0].mxu0
    %770 = vdwg.mxu0
    %v771 = vmul.f32 %v762, 0.5
    %v772 = vmul.f32 %v768, 0.5
    %v773 = vmul.f32 %v762, 0.70710677
    %v774 = vmul.f32 %v768, 0.70710677
    %v775 = verf.f32.pop %v773
    %v776 = verf.f32.pop %v774
    %v777 = vadd.f32 %v775, 1.0
    %v778 = vadd.f32 %v776, 1.0
    %v779 = vmul.f32 %v771, %v777
    %v780 = vmul.f32 %v772, %v778
    %v781 = vld [vmem:[#allocation8] sm:$0xff]
    %v782 = vld [vmem:[#allocation8 + $0x8] sm:$0xff]
    %v783 = vld [vmem:[#allocation8 + $0x10] sm:$0xff]
    %v784 = vld [vmem:[#allocation8 + $0x18] sm:$0xff]
    %v785 = vld [vmem:[#allocation8 + $0x20] sm:$0xff]
    %v786 = vld [vmem:[#allocation8 + $0x28] sm:$0xff]
    %v787 = vld [vmem:[#allocation8 + $0x30] sm:$0xff]
    %v788 = vld [vmem:[#allocation8 + $0x38] sm:$0xff]
    %v789 = vld [vmem:[#allocation8 + $0x40] sm:$0xff]
    %v790 = vld [vmem:[#allocation8 + $0x48] sm:$0xff]
    %v791 = vld [vmem:[#allocation8 + $0x50] sm:$0xff]
    %v792 = vld [vmem:[#allocation8 + $0x58] sm:$0xff]
    %v793 = vld [vmem:[#allocation8 + $0x60] sm:$0xff]
    %v794 = vld [vmem:[#allocation8 + $0x68] sm:$0xff]
    %v795 = vld [vmem:[#allocation8 + $0x70] sm:$0xff]
    %v796 = vld [vmem:[#allocation8 + $0x78] sm:$0xff]
    %797 = vmatprep.subr.mxu0 0.0
    %v798 = vand.u32 %v781, 4294901760
    %799 = vmatpush1.msra.mxu0 %v798
    %800 = vmatprep.subr.mxu0 0.0
    %v801 = vand.u32 %v782, 4294901760
    %802 = vmatpush1.msra.mxu0 %v801
    %803 = vmatprep.subr.mxu0 0.0
    %v804 = vand.u32 %v783, 4294901760
    %805 = vmatpush1.msra.mxu0 %v804
    %806 = vmatprep.subr.mxu0 0.0
    %v807 = vand.u32 %v784, 4294901760
    %808 = vmatpush1.msra.mxu0 %v807
    %809 = vmatprep.subr.mxu0 0.0
    %v810 = vand.u32 %v785, 4294901760
    %811 = vmatpush1.msra.mxu0 %v810
    %812 = vmatprep.subr.mxu0 0.0
    %v813 = vand.u32 %v786, 4294901760
    %814 = vmatpush1.msra.mxu0 %v813
    %815 = vmatprep.subr.mxu0 0.0
    %v816 = vand.u32 %v787, 4294901760
    %817 = vmatpush1.msra.mxu0 %v816
    %818 = vmatprep.subr.mxu0 0.0
    %v819 = vand.u32 %v788, 4294901760
    %820 = vmatpush1.msra.mxu0 %v819
    %821 = vmatprep.subr.mxu0 0.0
    %v822 = vand.u32 %v789, 4294901760
    %823 = vmatpush1.msra.mxu0 %v822
    %824 = vmatprep.subr.mxu0 0.0
    %v825 = vand.u32 %v790, 4294901760
    %826 = vmatpush1.msra.mxu0 %v825
    %827 = vmatprep.subr.mxu0 0.0
    %v828 = vand.u32 %v791, 4294901760
    %829 = vmatpush1.msra.mxu0 %v828
    %830 = vmatprep.subr.mxu0 0.0
    %v831 = vand.u32 %v792, 4294901760
    %832 = vmatpush1.msra.mxu0 %v831
    %833 = vmatprep.subr.mxu0 0.0
    %v834 = vand.u32 %v793, 4294901760
    %835 = vmatpush1.msra.mxu0 %v834
    %836 = vmatprep.subr.mxu0 0.0
    %v837 = vand.u32 %v794, 4294901760
    %838 = vmatpush1.msra.mxu0 %v837
    %839 = vmatprep.subr.mxu0 0.0
    %v840 = vand.u32 %v795, 4294901760
    %841 = vmatpush1.msra.mxu0 %v840
    %842 = vmatprep.subr.mxu0 0.0
    %v843 = vand.u32 %v796, 4294901760
    %844 = vmatpush1.msra.mxu0 %v843
    %845 = vmatprep.subr.mxu0 0.0
    %846 = vmatpush1.msra.mxu0 0.0
    %847 = vmatprep.subr.mxu0 0.0
    %848 = vmatpush1.msra.mxu0 0.0
    %849 = vmatprep.subr.mxu0 0.0
    %850 = vmatpush1.msra.mxu0 0.0
    %851 = vmatprep.subr.mxu0 0.0
    %852 = vmatpush1.msra.mxu0 0.0
    %853 = vmatprep.subr.mxu0 0.0
    %854 = vmatpush1.msra.mxu0 0.0
    %855 = vmatprep.subr.mxu0 0.0
    %856 = vmatpush1.msra.mxu0 0.0
    %857 = vmatprep.subr.mxu0 0.0
    %858 = vmatpush1.msra.mxu0 0.0
    %859 = vmatprep.subr.mxu0 0.0
    %860 = vmatpush1.msra.mxu0 0.0
    %861 = vmatprep.subr.mxu0 0.0
    %862 = vmatpush1.msra.mxu0 0.0
    %863 = vmatprep.subr.mxu0 0.0
    %864 = vmatpush1.msra.mxu0 0.0
    %865 = vmatprep.subr.mxu0 0.0
    %866 = vmatpush1.msra.mxu0 0.0
    %867 = vmatprep.subr.mxu0 0.0
    %868 = vmatpush1.msra.mxu0 0.0
    %869 = vmatprep.subr.mxu0 0.0
    %870 = vmatpush1.msra.mxu0 0.0
    %871 = vmatprep.subr.mxu0 0.0
    %872 = vmatpush1.msra.mxu0 0.0
    %873 = vmatprep.subr.mxu0 0.0
    %874 = vmatpush1.msra.mxu0 0.0
    %875 = vmatprep.subr.mxu0 0.0
    %876 = vmatpush1.msra.mxu0 0.0
    %877 = vmatprep.mubr.f32.mxu0 0.0
    %v878 = vand.u32 %v779, 4294901760
    %v879 = vsub.f32 %v779, %v878
    %v880 = vand.u32 %v879, 4294901760
    %v881 = vsub.f32 %v879, %v880
    %v882 = vand.u32 %v881, 4294901760
    %883 = vmatmul.mubr.f32.gmra.mrb[0].mxu0 %v882
    %v884 = vpop.f32.mrb[0].mxu0
    %v885 = vadd.f32 0.0, %v884
    %v886 = vpop.f32.mrb[0].mxu0
    %887 = vmatprep.mubr.f32.mxu0 0.0
    %v888 = vand.u32 %v780, 4294901760
    %v889 = vsub.f32 %v780, %v888
    %v890 = vand.u32 %v889, 4294901760
    %v891 = vsub.f32 %v889, %v890
    %v892 = vand.u32 %v891, 4294901760
    %893 = vmatmul.mubr.f32.gmra.mrb[0].mxu0 %v892
    %v894 = vpop.f32.mrb[0].mxu0
    %v895 = vadd.f32 0.0, %v894
    %v896 = vpop.f32.mrb[0].mxu0
    %897 = vdwg.mxu0
    %898 = vmatprep.subr.mxu0 0.0
    %v899 = vand.u32 %v781, 4294901760
    %v900 = vsub.f32 %v781, %v899
    %v901 = vand.u32 %v900, 4294901760
    %v902 = vsub.f32 %v900, %v901
    %v903 = vand.u32 %v902, 4294901760
    %904 = vmatpush1.msra.mxu0 %v903
    %905 = vmatprep.subr.mxu0 0.0
    %v906 = vand.u32 %v782, 4294901760
    %v907 = vsub.f32 %v782, %v906
    %v908 = vand.u32 %v907, 4294901760
    %v909 = vsub.f32 %v907, %v908
    %v910 = vand.u32 %v909, 4294901760
    %911 = vmatpush1.msra.mxu0 %v910
    %912 = vmatprep.subr.mxu0 0.0
    %v913 = vand.u32 %v783, 4294901760
    %v914 = vsub.f32 %v783, %v913
    %v915 = vand.u32 %v914, 4294901760
    %v916 = vsub.f32 %v914, %v915
    %v917 = vand.u32 %v916, 4294901760
    %918 = vmatpush1.msra.mxu0 %v917
    %919 = vmatprep.subr.mxu0 0.0
    %v920 = vand.u32 %v784, 4294901760
    %v921 = vsub.f32 %v784, %v920
    %v922 = vand.u32 %v921, 4294901760
    %v923 = vsub.f32 %v921, %v922
    %v924 = vand.u32 %v923, 4294901760
    %925 = vmatpush1.msra.mxu0 %v924
    %926 = vmatprep.subr.mxu0 0.0
    %v927 = vand.u32 %v785, 4294901760
    %v928 = vsub.f32 %v785, %v927
    %v929 = vand.u32 %v928, 4294901760
    %v930 = vsub.f32 %v928, %v929
    %v931 = vand.u32 %v930, 4294901760
    %932 = vmatpush1.msra.mxu0 %v931
    %933 = vmatprep.subr.mxu0 0.0
    %v934 = vand.u32 %v786, 4294901760
    %v935 = vsub.f32 %v786, %v934
    %v936 = vand.u32 %v935, 4294901760
    %v937 = vsub.f32 %v935, %v936
    %v938 = vand.u32 %v937, 4294901760
    %939 = vmatpush1.msra.mxu0 %v938
    %940 = vmatprep.subr.mxu0 0.0
    %v941 = vand.u32 %v787, 4294901760
    %v942 = vsub.f32 %v787, %v941
    %v943 = vand.u32 %v942, 4294901760
    %v944 = vsub.f32 %v942, %v943
    %v945 = vand.u32 %v944, 4294901760
    %946 = vmatpush1.msra.mxu0 %v945
    %947 = vmatprep.subr.mxu0 0.0
    %v948 = vand.u32 %v788, 4294901760
    %v949 = vsub.f32 %v788, %v948
    %v950 = vand.u32 %v949, 4294901760
    %v951 = vsub.f32 %v949, %v950
    %v952 = vand.u32 %v951, 4294901760
    %953 = vmatpush1.msra.mxu0 %v952
    %954 = vmatprep.subr.mxu0 0.0
    %v955 = vand.u32 %v789, 4294901760
    %v956 = vsub.f32 %v789, %v955
    %v957 = vand.u32 %v956, 4294901760
    %v958 = vsub.f32 %v956, %v957
    %v959 = vand.u32 %v958, 4294901760
    %960 = vmatpush1.msra.mxu0 %v959
    %961 = vmatprep.subr.mxu0 0.0
    %v962 = vand.u32 %v790, 4294901760
    %v963 = vsub.f32 %v790, %v962
    %v964 = vand.u32 %v963, 4294901760
    %v965 = vsub.f32 %v963, %v964
    %v966 = vand.u32 %v965, 4294901760
    %967 = vmatpush1.msra.mxu0 %v966
    %968 = vmatprep.subr.mxu0 0.0
    %v969 = vand.u32 %v791, 4294901760
    %v970 = vsub.f32 %v791, %v969
    %v971 = vand.u32 %v970, 4294901760
    %v972 = vsub.f32 %v970, %v971
    %v973 = vand.u32 %v972, 4294901760
    %974 = vmatpush1.msra.mxu0 %v973
    %975 = vmatprep.subr.mxu0 0.0
    %v976 = vand.u32 %v792, 4294901760
    %v977 = vsub.f32 %v792, %v976
    %v978 = vand.u32 %v977, 4294901760
    %v979 = vsub.f32 %v977, %v978
    %v980 = vand.u32 %v979, 4294901760
    %981 = vmatpush1.msra.mxu0 %v980
    %982 = vmatprep.subr.mxu0 0.0
    %v983 = vand.u32 %v793, 4294901760
    %v984 = vsub.f32 %v793, %v983
    %v985 = vand.u32 %v984, 4294901760
    %v986 = vsub.f32 %v984, %v985
    %v987 = vand.u32 %v986, 4294901760
    %988 = vmatpush1.msra.mxu0 %v987
    %989 = vmatprep.subr.mxu0 0.0
    %v990 = vand.u32 %v794, 4294901760
    %v991 = vsub.f32 %v794, %v990
    %v992 = vand.u32 %v991, 4294901760
    %v993 = vsub.f32 %v991, %v992
    %v994 = vand.u32 %v993, 4294901760
    %995 = vmatpush1.msra.mxu0 %v994
    %996 = vmatprep.subr.mxu0 0.0
    %v997 = vand.u32 %v795, 4294901760
    %v998 = vsub.f32 %v795, %v997
    %v999 = vand.u32 %v998, 4294901760
    %v1000 = vsub.f32 %v998, %v999
    %v1001 = vand.u32 %v1000, 4294901760
    %1002 = vmatpush1.msra.mxu0 %v1001
    %1003 = vmatprep.subr.mxu0 0.0
    %v1004 = vand.u32 %v796, 4294901760
    %v1005 = vsub.f32 %v796, %v1004
    %v1006 = vand.u32 %v1005, 4294901760
    %v1007 = vsub.f32 %v1005, %v1006
    %v1008 = vand.u32 %v1007, 4294901760
    %1009 = vmatpush1.msra.mxu0 %v1008
    %1010 = vmatprep.subr.mxu0 0.0
    %1011 = vmatpush1.msra.mxu0 0.0
    %1012 = vmatprep.subr.mxu0 0.0
    %1013 = vmatpush1.msra.mxu0 0.0
    %1014 = vmatprep.subr.mxu0 0.0
    %1015 = vmatpush1.msra.mxu0 0.0
    %1016 = vmatprep.subr.mxu0 0.0
    %1017 = vmatpush1.msra.mxu0 0.0
    %1018 = vmatprep.subr.mxu0 0.0
    %1019 = vmatpush1.msra.mxu0 0.0
    %1020 = vmatprep.subr.mxu0 0.0
    %1021 = vmatpush1.msra.mxu0 0.0
    %1022 = vmatprep.subr.mxu0 0.0
    %1023 = vmatpush1.msra.mxu0 0.0
    %1024 = vmatprep.subr.mxu0 0.0
    %1025 = vmatpush1.msra.mxu0 0.0
    %1026 = vmatprep.subr.mxu0 0.0
    %1027 = vmatpush1.msra.mxu0 0.0
    %1028 = vmatprep.subr.mxu0 0.0
    %1029 = vmatpush1.msra.mxu0 0.0
    %1030 = vmatprep.subr.mxu0 0.0
    %1031 = vmatpush1.msra.mxu0 0.0
    %1032 = vmatprep.subr.mxu0 0.0
    %1033 = vmatpush1.msra.mxu0 0.0
    %1034 = vmatprep.subr.mxu0 0.0
    %1035 = vmatpush1.msra.mxu0 0.0
    %1036 = vmatprep.subr.mxu0 0.0
    %1037 = vmatpush1.msra.mxu0 0.0
    %1038 = vmatprep.subr.mxu0 0.0
    %1039 = vmatpush1.msra.mxu0 0.0
    %1040 = vmatprep.subr.mxu0 0.0
    %1041 = vmatpush1.msra.mxu0 0.0
    %1042 = vmatprep.mubr.f32.mxu0 0.0
    %v1043 = vand.u32 %v779, 4294901760
    %1044 = vmatmul.mubr.f32.gmra.mrb[0].mxu0 %v1043
    %v1045 = vpop.f32.mrb[0].mxu0
    %v1046 = vadd.f32 %v885, %v1045
    %v1047 = vpop.f32.mrb[0].mxu0
    %1048 = vmatprep.mubr.f32.mxu0 0.0
    %v1049 = vand.u32 %v780, 4294901760
    %1050 = vmatmul.mubr.f32.gmra.mrb[0].mxu0 %v1049
    %v1051 = vpop.f32.mrb[0].mxu0
    %v1052 = vadd.f32 %v895, %v1051
    %v1053 = vpop.f32.mrb[0].mxu0
    %1054 = vdwg.mxu0
    %1055 = vmatprep.subr.mxu0 0.0
    %v1056 = vand.u32 %v781, 4294901760
    %v1057 = vsub.f32 %v781, %v1056
    %1058 = vmatpush1.msra.mxu0 %v1057
    %1059 = vmatprep.subr.mxu0 0.0
    %v1060 = vand.u32 %v782, 4294901760
    %v1061 = vsub.f32 %v782, %v1060
    %1062 = vmatpush1.msra.mxu0 %v1061
    %1063 = vmatprep.subr.mxu0 0.0
    %v1064 = vand.u32 %v783, 4294901760
    %v1065 = vsub.f32 %v783, %v1064
    %1066 = vmatpush1.msra.mxu0 %v1065
    %1067 = vmatprep.subr.mxu0 0.0
    %v1068 = vand.u32 %v784, 4294901760
    %v1069 = vsub.f32 %v784, %v1068
    %1070 = vmatpush1.msra.mxu0 %v1069
    %1071 = vmatprep.subr.mxu0 0.0
    %v1072 = vand.u32 %v785, 4294901760
    %v1073 = vsub.f32 %v785, %v1072
    %1074 = vmatpush1.msra.mxu0 %v1073
    %1075 = vmatprep.subr.mxu0 0.0
    %v1076 = vand.u32 %v786, 4294901760
    %v1077 = vsub.f32 %v786, %v1076
    %1078 = vmatpush1.msra.mxu0 %v1077
    %1079 = vmatprep.subr.mxu0 0.0
    %v1080 = vand.u32 %v787, 4294901760
    %v1081 = vsub.f32 %v787, %v1080
    %1082 = vmatpush1.msra.mxu0 %v1081
    %1083 = vmatprep.subr.mxu0 0.0
    %v1084 = vand.u32 %v788, 4294901760
    %v1085 = vsub.f32 %v788, %v1084
    %1086 = vmatpush1.msra.mxu0 %v1085
    %1087 = vmatprep.subr.mxu0 0.0
    %v1088 = vand.u32 %v789, 4294901760
    %v1089 = vsub.f32 %v789, %v1088
    %1090 = vmatpush1.msra.mxu0 %v1089
    %1091 = vmatprep.subr.mxu0 0.0
    %v1092 = vand.u32 %v790, 4294901760
    %v1093 = vsub.f32 %v790, %v1092
    %1094 = vmatpush1.msra.mxu0 %v1093
    %1095 = vmatprep.subr.mxu0 0.0
    %v1096 = vand.u32 %v791, 4294901760
    %v1097 = vsub.f32 %v791, %v1096
    %1098 = vmatpush1.msra.mxu0 %v1097
    %1099 = vmatprep.subr.mxu0 0.0
    %v1100 = vand.u32 %v792, 4294901760
    %v1101 = vsub.f32 %v792, %v1100
    %1102 = vmatpush1.msra.mxu0 %v1101
    %1103 = vmatprep.subr.mxu0 0.0
    %v1104 = vand.u32 %v793, 4294901760
    %v1105 = vsub.f32 %v793, %v1104
    %1106 = vmatpush1.msra.mxu0 %v1105
    %1107 = vmatprep.subr.mxu0 0.0
    %v1108 = vand.u32 %v794, 4294901760
    %v1109 = vsub.f32 %v794, %v1108
    %1110 = vmatpush1.msra.mxu0 %v1109
    %1111 = vmatprep.subr.mxu0 0.0
    %v1112 = vand.u32 %v795, 4294901760
    %v1113 = vsub.f32 %v795, %v1112
    %1114 = vmatpush1.msra.mxu0 %v1113
    %1115 = vmatprep.subr.mxu0 0.0
    %v1116 = vand.u32 %v796, 4294901760
    %v1117 = vsub.f32 %v796, %v1116
    %1118 = vmatpush1.msra.mxu0 %v1117
    %1119 = vmatprep.subr.mxu0 0.0
    %1120 = vmatpush1.msra.mxu0 0.0
    %1121 = vmatprep.subr.mxu0 0.0
    %1122 = vmatpush1.msra.mxu0 0.0
    %1123 = vmatprep.subr.mxu0 0.0
    %1124 = vmatpush1.msra.mxu0 0.0
    %1125 = vmatprep.subr.mxu0 0.0
    %1126 = vmatpush1.msra.mxu0 0.0
    %1127 = vmatprep.subr.mxu0 0.0
    %1128 = vmatpush1.msra.mxu0 0.0
    %1129 = vmatprep.subr.mxu0 0.0
    %1130 = vmatpush1.msra.mxu0 0.0
    %1131 = vmatprep.subr.mxu0 0.0
    %1132 = vmatpush1.msra.mxu0 0.0
    %1133 = vmatprep.subr.mxu0 0.0
    %1134 = vmatpush1.msra.mxu0 0.0
    %1135 = vmatprep.subr.mxu0 0.0
    %1136 = vmatpush1.msra.mxu0 0.0
    %1137 = vmatprep.subr.mxu0 0.0
    %1138 = vmatpush1.msra.mxu0 0.0
    %1139 = vmatprep.subr.mxu0 0.0
    %1140 = vmatpush1.msra.mxu0 0.0
    %1141 = vmatprep.subr.mxu0 0.0
    %1142 = vmatpush1.msra.mxu0 0.0
    %1143 = vmatprep.subr.mxu0 0.0
    %1144 = vmatpush1.msra.mxu0 0.0
    %1145 = vmatprep.subr.mxu0 0.0
    %1146 = vmatpush1.msra.mxu0 0.0
    %1147 = vmatprep.subr.mxu0 0.0
    %1148 = vmatpush1.msra.mxu0 0.0
    %1149 = vmatprep.subr.mxu0 0.0
    %1150 = vmatpush1.msra.mxu0 0.0
    %1151 = vmatprep.mubr.f32.mxu0 0.0
    %v1152 = vand.u32 %v779, 4294901760
    %v1153 = vsub.f32 %v779, %v1152
    %1154 = vmatmul.mubr.f32.gmra.mrb[0].mxu0 %v1153
    %v1155 = vpop.f32.mrb[0].mxu0
    %v1156 = vadd.f32 %v1046, %v1155
    %v1157 = vpop.f32.mrb[0].mxu0
    %1158 = vmatprep.mubr.f32.mxu0 0.0
    %v1159 = vand.u32 %v780, 4294901760
    %v1160 = vsub.f32 %v780, %v1159
    %1161 = vmatmul.mubr.f32.gmra.mrb[0].mxu0 %v1160
    %v1162 = vpop.f32.mrb[0].mxu0
    %v1163 = vadd.f32 %v1052, %v1162
    %v1164 = vpop.f32.mrb[0].mxu0
    %1165 = vdwg.mxu0
    %1166 = vmatprep.subr.mxu0 0.0
    %v1167 = vand.u32 %v781, 4294901760
    %1168 = vmatpush1.msra.mxu0 %v1167
    %1169 = vmatprep.subr.mxu0 0.0
    %v1170 = vand.u32 %v782, 4294901760
    %1171 = vmatpush1.msra.mxu0 %v1170
    %1172 = vmatprep.subr.mxu0 0.0
    %v1173 = vand.u32 %v783, 4294901760
    %1174 = vmatpush1.msra.mxu0 %v1173
    %1175 = vmatprep.subr.mxu0 0.0
    %v1176 = vand.u32 %v784, 4294901760
    %1177 = vmatpush1.msra.mxu0 %v1176
    %1178 = vmatprep.subr.mxu0 0.0
    %v1179 = vand.u32 %v785, 4294901760
    %1180 = vmatpush1.msra.mxu0 %v1179
    %1181 = vmatprep.subr.mxu0 0.0
    %v1182 = vand.u32 %v786, 4294901760
    %1183 = vmatpush1.msra.mxu0 %v1182
    %1184 = vmatprep.subr.mxu0 0.0
    %v1185 = vand.u32 %v787, 4294901760
    %1186 = vmatpush1.msra.mxu0 %v1185
    %1187 = vmatprep.subr.mxu0 0.0
    %v1188 = vand.u32 %v788, 4294901760
    %1189 = vmatpush1.msra.mxu0 %v1188
    %1190 = vmatprep.subr.mxu0 0.0
    %v1191 = vand.u32 %v789, 4294901760
    %1192 = vmatpush1.msra.mxu0 %v1191
    %1193 = vmatprep.subr.mxu0 0.0
    %v1194 = vand.u32 %v790, 4294901760
    %1195 = vmatpush1.msra.mxu0 %v1194
    %1196 = vmatprep.subr.mxu0 0.0
    %v1197 = vand.u32 %v791, 4294901760
    %1198 = vmatpush1.msra.mxu0 %v1197
    %1199 = vmatprep.subr.mxu0 0.0
    %v1200 = vand.u32 %v792, 4294901760
    %1201 = vmatpush1.msra.mxu0 %v1200
    %1202 = vmatprep.subr.mxu0 0.0
    %v1203 = vand.u32 %v793, 4294901760
    %1204 = vmatpush1.msra.mxu0 %v1203
    %1205 = vmatprep.subr.mxu0 0.0
    %v1206 = vand.u32 %v794, 4294901760
    %1207 = vmatpush1.msra.mxu0 %v1206
    %1208 = vmatprep.subr.mxu0 0.0
    %v1209 = vand.u32 %v795, 4294901760
    %1210 = vmatpush1.msra.mxu0 %v1209
    %1211 = vmatprep.subr.mxu0 0.0
    %v1212 = vand.u32 %v796, 4294901760
    %1213 = vmatpush1.msra.mxu0 %v1212
    %1214 = vmatprep.subr.mxu0 0.0
    %1215 = vmatpush1.msra.mxu0 0.0
    %1216 = vmatprep.subr.mxu0 0.0
    %1217 = vmatpush1.msra.mxu0 0.0
    %1218 = vmatprep.subr.mxu0 0.0
    %1219 = vmatpush1.msra.mxu0 0.0
    %1220 = vmatprep.subr.mxu0 0.0
    %1221 = vmatpush1.msra.mxu0 0.0
    %1222 = vmatprep.subr.mxu0 0.0
    %1223 = vmatpush1.msra.mxu0 0.0
    %1224 = vmatprep.subr.mxu0 0.0
    %1225 = vmatpush1.msra.mxu0 0.0
    %1226 = vmatprep.subr.mxu0 0.0
    %1227 = vmatpush1.msra.mxu0 0.0
    %1228 = vmatprep.subr.mxu0 0.0
    %1229 = vmatpush1.msra.mxu0 0.0
    %1230 = vmatprep.subr.mxu0 0.0
    %1231 = vmatpush1.msra.mxu0 0.0
    %1232 = vmatprep.subr.mxu0 0.0
    %1233 = vmatpush1.msra.mxu0 0.0
    %1234 = vmatprep.subr.mxu0 0.0
    %1235 = vmatpush1.msra.mxu0 0.0
    %1236 = vmatprep.subr.mxu0 0.0
    %1237 = vmatpush1.msra.mxu0 0.0
    %1238 = vmatprep.subr.mxu0 0.0
    %1239 = vmatpush1.msra.mxu0 0.0
    %1240 = vmatprep.subr.mxu0 0.0
    %1241 = vmatpush1.msra.mxu0 0.0
    %1242 = vmatprep.subr.mxu0 0.0
    %1243 = vmatpush1.msra.mxu0 0.0
    %1244 = vmatprep.subr.mxu0 0.0
    %1245 = vmatpush1.msra.mxu0 0.0
    %1246 = vmatprep.mubr.f32.mxu0 0.0
    %v1247 = vand.u32 %v779, 4294901760
    %v1248 = vsub.f32 %v779, %v1247
    %v1249 = vand.u32 %v1248, 4294901760
    %1250 = vmatmul.mubr.f32.gmra.mrb[0].mxu0 %v1249
    %v1251 = vpop.f32.mrb[0].mxu0
    %v1252 = vadd.f32 %v1156, %v1251
    %v1253 = vpop.f32.mrb[0].mxu0
    %1254 = vmatprep.mubr.f32.mxu0 0.0
    %v1255 = vand.u32 %v780, 4294901760
    %v1256 = vsub.f32 %v780, %v1255
    %v1257 = vand.u32 %v1256, 4294901760
    %1258 = vmatmul.mubr.f32.gmra.mrb[0].mxu0 %v1257
    %v1259 = vpop.f32.mrb[0].mxu0
    %v1260 = vadd.f32 %v1163, %v1259
    %v1261 = vpop.f32.mrb[0].mxu0
    %1262 = vdwg.mxu0
    %1263 = vmatprep.subr.mxu0 0.0
    %v1264 = vand.u32 %v781, 4294901760
    %v1265 = vsub.f32 %v781, %v1264
    %v1266 = vand.u32 %v1265, 4294901760
    %1267 = vmatpush1.msra.mxu0 %v1266
    %1268 = vmatprep.subr.mxu0 0.0
    %v1269 = vand.u32 %v782, 4294901760
    %v1270 = vsub.f32 %v782, %v1269
    %v1271 = vand.u32 %v1270, 4294901760
    %1272 = vmatpush1.msra.mxu0 %v1271
    %1273 = vmatprep.subr.mxu0 0.0
    %v1274 = vand.u32 %v783, 4294901760
    %v1275 = vsub.f32 %v783, %v1274
    %v1276 = vand.u32 %v1275, 4294901760
    %1277 = vmatpush1.msra.mxu0 %v1276
    %1278 = vmatprep.subr.mxu0 0.0
    %v1279 = vand.u32 %v784, 4294901760
    %v1280 = vsub.f32 %v784, %v1279
    %v1281 = vand.u32 %v1280, 4294901760
    %1282 = vmatpush1.msra.mxu0 %v1281
    %1283 = vmatprep.subr.mxu0 0.0
    %v1284 = vand.u32 %v785, 4294901760
    %v1285 = vsub.f32 %v785, %v1284
    %v1286 = vand.u32 %v1285, 4294901760
    %1287 = vmatpush1.msra.mxu0 %v1286
    %1288 = vmatprep.subr.mxu0 0.0
    %v1289 = vand.u32 %v786, 4294901760
    %v1290 = vsub.f32 %v786, %v1289
    %v1291 = vand.u32 %v1290, 4294901760
    %1292 = vmatpush1.msra.mxu0 %v1291
    %1293 = vmatprep.subr.mxu0 0.0
    %v1294 = vand.u32 %v787, 4294901760
    %v1295 = vsub.f32 %v787, %v1294
    %v1296 = vand.u32 %v1295, 4294901760
    %1297 = vmatpush1.msra.mxu0 %v1296
    %1298 = vmatprep.subr.mxu0 0.0
    %v1299 = vand.u32 %v788, 4294901760
    %v1300 = vsub.f32 %v788, %v1299
    %v1301 = vand.u32 %v1300, 4294901760
    %1302 = vmatpush1.msra.mxu0 %v1301
    %1303 = vmatprep.subr.mxu0 0.0
    %v1304 = vand.u32 %v789, 4294901760
    %v1305 = vsub.f32 %v789, %v1304
    %v1306 = vand.u32 %v1305, 4294901760
    %1307 = vmatpush1.msra.mxu0 %v1306
    %1308 = vmatprep.subr.mxu0 0.0
    %v1309 = vand.u32 %v790, 4294901760
    %v1310 = vsub.f32 %v790, %v1309
    %v1311 = vand.u32 %v1310, 4294901760
    %1312 = vmatpush1.msra.mxu0 %v1311
    %1313 = vmatprep.subr.mxu0 0.0
    %v1314 = vand.u32 %v791, 4294901760
    %v1315 = vsub.f32 %v791, %v1314
    %v1316 = vand.u32 %v1315, 4294901760
    %1317 = vmatpush1.msra.mxu0 %v1316
    %1318 = vmatprep.subr.mxu0 0.0
    %v1319 = vand.u32 %v792, 4294901760
    %v1320 = vsub.f32 %v792, %v1319
    %v1321 = vand.u32 %v1320, 4294901760
    %1322 = vmatpush1.msra.mxu0 %v1321
    %1323 = vmatprep.subr.mxu0 0.0
    %v1324 = vand.u32 %v793, 4294901760
    %v1325 = vsub.f32 %v793, %v1324
    %v1326 = vand.u32 %v1325, 4294901760
    %1327 = vmatpush1.msra.mxu0 %v1326
    %1328 = vmatprep.subr.mxu0 0.0
    %v1329 = vand.u32 %v794, 4294901760
    %v1330 = vsub.f32 %v794, %v1329
    %v1331 = vand.u32 %v1330, 4294901760
    %1332 = vmatpush1.msra.mxu0 %v1331
    %1333 = vmatprep.subr.mxu0 0.0
    %v1334 = vand.u32 %v795, 4294901760
    %v1335 = vsub.f32 %v795, %v1334
    %v1336 = vand.u32 %v1335, 4294901760
    %1337 = vmatpush1.msra.mxu0 %v1336
    %1338 = vmatprep.subr.mxu0 0.0
    %v1339 = vand.u32 %v796, 4294901760
    %v1340 = vsub.f32 %v796, %v1339
    %v1341 = vand.u32 %v1340, 4294901760
    %1342 = vmatpush1.msra.mxu0 %v1341
    %1343 = vmatprep.subr.mxu0 0.0
    %1344 = vmatpush1.msra.mxu0 0.0
    %1345 = vmatprep.subr.mxu0 0.0
    %1346 = vmatpush1.msra.mxu0 0.0
    %1347 = vmatprep.subr.mxu0 0.0
    %1348 = vmatpush1.msra.mxu0 0.0
    %1349 = vmatprep.subr.mxu0 0.0
    %1350 = vmatpush1.msra.mxu0 0.0
    %1351 = vmatprep.subr.mxu0 0.0
    %1352 = vmatpush1.msra.mxu0 0.0
    %1353 = vmatprep.subr.mxu0 0.0
    %1354 = vmatpush1.msra.mxu0 0.0
    %1355 = vmatprep.subr.mxu0 0.0
    %1356 = vmatpush1.msra.mxu0 0.0
    %1357 = vmatprep.subr.mxu0 0.0
    %1358 = vmatpush1.msra.mxu0 0.0
    %1359 = vmatprep.subr.mxu0 0.0
    %1360 = vmatpush1.msra.mxu0 0.0
    %1361 = vmatprep.subr.mxu0 0.0
    %1362 = vmatpush1.msra.mxu0 0.0
    %1363 = vmatprep.subr.mxu0 0.0
    %1364 = vmatpush1.msra.mxu0 0.0
    %1365 = vmatprep.subr.mxu0 0.0
    %1366 = vmatpush1.msra.mxu0 0.0
    %1367 = vmatprep.subr.mxu0 0.0
    %1368 = vmatpush1.msra.mxu0 0.0
    %1369 = vmatprep.subr.mxu0 0.0
    %1370 = vmatpush1.msra.mxu0 0.0
    %1371 = vmatprep.subr.mxu0 0.0
    %1372 = vmatpush1.msra.mxu0 0.0
    %1373 = vmatprep.subr.mxu0 0.0
    %1374 = vmatpush1.msra.mxu0 0.0
    %1375 = vmatprep.mubr.f32.mxu0 0.0
    %v1376 = vand.u32 %v779, 4294901760
    %1377 = vmatmul.mubr.f32.gmra.mrb[0].mxu0 %v1376
    %v1378 = vpop.f32.mrb[0].mxu0
    %v1379 = vadd.f32 %v1252, %v1378
    %v1380 = vpop.f32.mrb[0].mxu0
    %1381 = vmatprep.mubr.f32.mxu0 0.0
    %v1382 = vand.u32 %v780, 4294901760
    %1383 = vmatmul.mubr.f32.gmra.mrb[0].mxu0 %v1382
    %v1384 = vpop.f32.mrb[0].mxu0
    %v1385 = vadd.f32 %v1260, %v1384
    %v1386 = vpop.f32.mrb[0].mxu0
    %1387 = vdwg.mxu0
    %1388 = vmatprep.subr.mxu0 0.0
    %v1389 = vand.u32 %v781, 4294901760
    %1390 = vmatpush1.msra.mxu0 %v1389
    %1391 = vmatprep.subr.mxu0 0.0
    %v1392 = vand.u32 %v782, 4294901760
    %1393 = vmatpush1.msra.mxu0 %v1392
    %1394 = vmatprep.subr.mxu0 0.0
    %v1395 = vand.u32 %v783, 4294901760
    %1396 = vmatpush1.msra.mxu0 %v1395
    %1397 = vmatprep.subr.mxu0 0.0
    %v1398 = vand.u32 %v784, 4294901760
    %1399 = vmatpush1.msra.mxu0 %v1398
    %1400 = vmatprep.subr.mxu0 0.0
    %v1401 = vand.u32 %v785, 4294901760
    %1402 = vmatpush1.msra.mxu0 %v1401
    %1403 = vmatprep.subr.mxu0 0.0
    %v1404 = vand.u32 %v786, 4294901760
    %1405 = vmatpush1.msra.mxu0 %v1404
    %1406 = vmatprep.subr.mxu0 0.0
    %v1407 = vand.u32 %v787, 4294901760
    %1408 = vmatpush1.msra.mxu0 %v1407
    %1409 = vmatprep.subr.mxu0 0.0
    %v1410 = vand.u32 %v788, 4294901760
    %1411 = vmatpush1.msra.mxu0 %v1410
    %1412 = vmatprep.subr.mxu0 0.0
    %v1413 = vand.u32 %v789, 4294901760
    %1414 = vmatpush1.msra.mxu0 %v1413
    %1415 = vmatprep.subr.mxu0 0.0
    %v1416 = vand.u32 %v790, 4294901760
    %1417 = vmatpush1.msra.mxu0 %v1416
    %1418 = vmatprep.subr.mxu0 0.0
    %v1419 = vand.u32 %v791, 4294901760
    %1420 = vmatpush1.msra.mxu0 %v1419
    %1421 = vmatprep.subr.mxu0 0.0
    %v1422 = vand.u32 %v792, 4294901760
    %1423 = vmatpush1.msra.mxu0 %v1422
    %1424 = vmatprep.subr.mxu0 0.0
    %v1425 = vand.u32 %v793, 4294901760
    %1426 = vmatpush1.msra.mxu0 %v1425
    %1427 = vmatprep.subr.mxu0 0.0
    %v1428 = vand.u32 %v794, 4294901760
    %1429 = vmatpush1.msra.mxu0 %v1428
    %1430 = vmatprep.subr.mxu0 0.0
    %v1431 = vand.u32 %v795, 4294901760
    %1432 = vmatpush1.msra.mxu0 %v1431
    %1433 = vmatprep.subr.mxu0 0.0
    %v1434 = vand.u32 %v796, 4294901760
    %1435 = vmatpush1.msra.mxu0 %v1434
    %1436 = vmatprep.subr.mxu0 0.0
    %1437 = vmatpush1.msra.mxu0 0.0
    %1438 = vmatprep.subr.mxu0 0.0
    %1439 = vmatpush1.msra.mxu0 0.0
    %1440 = vmatprep.subr.mxu0 0.0
    %1441 = vmatpush1.msra.mxu0 0.0
    %1442 = vmatprep.subr.mxu0 0.0
    %1443 = vmatpush1.msra.mxu0 0.0
    %1444 = vmatprep.subr.mxu0 0.0
    %1445 = vmatpush1.msra.mxu0 0.0
    %1446 = vmatprep.subr.mxu0 0.0
    %1447 = vmatpush1.msra.mxu0 0.0
    %1448 = vmatprep.subr.mxu0 0.0
    %1449 = vmatpush1.msra.mxu0 0.0
    %1450 = vmatprep.subr.mxu0 0.0
    %1451 = vmatpush1.msra.mxu0 0.0
    %1452 = vmatprep.subr.mxu0 0.0
    %1453 = vmatpush1.msra.mxu0 0.0
    %1454 = vmatprep.subr.mxu0 0.0
    %1455 = vmatpush1.msra.mxu0 0.0
    %1456 = vmatprep.subr.mxu0 0.0
    %1457 = vmatpush1.msra.mxu0 0.0
    %1458 = vmatprep.subr.mxu0 0.0
    %1459 = vmatpush1.msra.mxu0 0.0
    %1460 = vmatprep.subr.mxu0 0.0
    %1461 = vmatpush1.msra.mxu0 0.0
    %1462 = vmatprep.subr.mxu0 0.0
    %1463 = vmatpush1.msra.mxu0 0.0
    %1464 = vmatprep.subr.mxu0 0.0
    %1465 = vmatpush1.msra.mxu0 0.0
    %1466 = vmatprep.subr.mxu0 0.0
    %1467 = vmatpush1.msra.mxu0 0.0
    %1468 = vmatprep.mubr.f32.mxu0 0.0
    %v1469 = vand.u32 %v779, 4294901760
    %1470 = vmatmul.mubr.f32.gmra.mrb[0].mxu0 %v1469
    %v1471 = vpop.f32.mrb[0].mxu0
    %v1472 = vadd.f32 %v1379, %v1471
    %v1473 = vpop.f32.mrb[0].mxu0
    %1474 = vmatprep.mubr.f32.mxu0 0.0
    %v1475 = vand.u32 %v780, 4294901760
    %1476 = vmatmul.mubr.f32.gmra.mrb[0].mxu0 %v1475
    %v1477 = vpop.f32.mrb[0].mxu0
    %v1478 = vadd.f32 %v1385, %v1477
    %v1479 = vpop.f32.mrb[0].mxu0
    %1480 = vdwg.mxu0
    %p1481 = scmp.eq.s32.totalorder 0, 0
    // Predicated region
    $region34: #{tpu_custom_call.1} parent=1 // pred_check
      %p1482 = pneg %p1481
    $region35: #{tpu_custom_call.1} parent=1 // pred_check_branch
      %1484 = sbr.rel (%p1482) target = $region37
    $region36: #{tpu_custom_call.1} parent=1 // pred_region
      %1485 = vst [vmem:[#allocation2] sm:$0xff] %v1472
      %1486 = vst [vmem:[#allocation2 + $0x8] sm:$0xff] %v1478
    $region37: #{tpu_custom_call.1} parent=1 // pred_fallthru
      _
    %p1487 = scmp.gt.s32.totalorder 0, 0
    // Predicated region
    $region38: #{tpu_custom_call.1} parent=1 // pred_check
      %p1488 = pneg %p1487
    $region39: #{tpu_custom_call.1} parent=1 // pred_check_branch
      %1490 = sbr.rel (%p1488) target = $region41
    $region40: #{tpu_custom_call.1} parent=1 // pred_region
      %v1491 = vld [vmem:[#allocation2] sm:$0xff]
      %v1492 = vld [vmem:[#allocation2 + $0x8] sm:$0xff]
      %v1493 = vadd.f32 %v1491, %v1472
      %v1494 = vadd.f32 %v1492, %v1478
      %1495 = vst [vmem:[#allocation2] sm:$0xff] %v1493
      %1496 = vst [vmem:[#allocation2 + $0x8] sm:$0xff] %v1494
    $region41: #{tpu_custom_call.1} parent=1 // pred_fallthru
      _
    // Predicated region
    $region42: #{tpu_custom_call.1} parent=1 // pred_check
      %p1497 = pneg %p1481
    $region43: #{tpu_custom_call.1} parent=1 // pred_check_branch
      %1499 = sbr.rel (%p1497) target = $region45
    $region44: #{tpu_custom_call.1} parent=1 // pred_region
      %v1500 = vld [vmem:[#allocation2] sm:$0xff]
      %v1501 = vld [vmem:[#allocation2 + $0x8] sm:$0xff]
      %v1502 = vld [vmem:[%s4] sm:$0x1]
      %v1504 = vlaneseq
      %v1505 = vshrl.u32 %v1504, 7
      %v1506 = vsub.s32 0, %v1505
      %v1507 = vrot.slane %v1502, %v1506
      %v1509 = vadd.f32 %v1500, %v1507
      %v1510 = vadd.f32 %v1501, %v1507
      %1511 = vst [vmem:[#allocation9] sm:$0xff] %v1509
      %1512 = vst [vmem:[#allocation9 + $0x8] sm:$0xff] %v1510
    $region45: #{tpu_custom_call.1} parent=1 // pred_fallthru
      _
    // Predicated region
    $region46: #{tpu_custom_call.1} parent=1 // pred_check
      _
    $region47: #{tpu_custom_call.1} parent=1 // pred_check_branch
      %1514 = sbr.rel (0) target = $region49
    $region48: #{tpu_custom_call.1} parent=1 // pred_region
      %s1516 = ssub.s32 256, 256
      %1517 = vsyncadd [#allocation5], %s1516
      %s1518 = sshll.u32 [#allocation9], 4
      %s1519 = int_to_ptr.vmem [resolvable:$true] %s1518
      %1524 = dma.vmem_to_hbm [thread:$0]  %s1519, 256, %s5, [#allocation5], 128, 128, 8
    $region49: #{tpu_custom_call.1} parent=1 // pred_fallthru
      _
    // Predicated region
    $region50: #{tpu_custom_call.1} parent=1 // pred_check
      _
    $region51: #{tpu_custom_call.1} parent=1 // pred_check_branch
      %1526 = sbr.rel (0) target = $region53
    $region52: #{tpu_custom_call.1} parent=1 // pred_region
      %1527 = dma.done [#allocation5], 256
    $region53: #{tpu_custom_call.1} parent=1 // pred_fallthru
      _
    %1528 = vsyncpa [#allocation4], 1
    %1529 = vsyncpa [#allocation7], 1
    %1530 = vsyncpa [#allocation5], 1

</llo_original>
